<compile_context>
chip_gen: v7x
topology: tpu7x:2x2x1
jax: 0.10.0
libtpu: 0.0.40
codegen_flags: <defaults>
</compile_context>

<pallas_src>
import numpy as np
import jax
import jax.numpy as jnp
from jax.experimental import pallas as pl
from jax.experimental.pallas import tpu as pltpu

IMAGENET_MEAN = np.array([0.485, 0.456, 0.406], np.float32)
IMAGENET_STD = np.array([0.229, 0.224, 0.225], np.float32)

NUM_CLASSES = 11        # LaPa face parsing: classes 0..10
NUM_CHANNELS = 3
SEG_SIZE = 448          # segmentation-net input resolution (as in the module)
BLUR_K = 5
BLUR_SIGMA = 2.0        # TODO(synk): torchvision samples sigma ~ U(0.1, 5) per call;
                        # fixed here for determinism.


# ---------------------------------------------------------------------------
# Trace-time constant matrices (all shapes static, built with numpy).
# ---------------------------------------------------------------------------
def _resample_matrix(in_size, out_size):
    """(out_size, in_size) matrix composing
         bilinear(in_size -> SEG_SIZE, align_corners=False)  [F.interpolate bilinear]
       with
         nearest(SEG_SIZE -> out_size), src = floor(dst * SEG_SIZE / out_size).
       The SEG_SIZE grid is never materialized."""
    q = (np.arange(out_size) * SEG_SIZE) // out_size          # selected 448-grid coords
    src = (q.astype(np.float64) + 0.5) * (in_size / SEG_SIZE) - 0.5
    src = np.maximum(src, 0.0)                                # PyTorch clamps at 0
    i0 = np.minimum(np.floor(src).astype(np.int64), in_size - 1)
    i1 = np.minimum(i0 + 1, in_size - 1)
    frac = (src - i0).astype(np.float32)
    R = np.zeros((out_size, in_size), np.float32)
    rows = np.arange(out_size)
    np.add.at(R, (rows, i0), 1.0 - frac)
    np.add.at(R, (rows, i1), frac)
    return R


def _gaussian_kernel1d(ksize, sigma):
    half = (ksize - 1) * 0.5
    xs = np.linspace(-half, half, ksize)
    pdf = np.exp(-0.5 * (xs / sigma) ** 2)
    return (pdf / pdf.sum()).astype(np.float32)


def _blur_matrix(size, k1):
    """(size, size) matrix of the 1-D 5-tap Gaussian with reflect padding folded in.
       Bm @ mask @ Bm.T  ==  conv2d(reflect_pad(mask, 2), outer(k1, k1))."""
    half = BLUR_K // 2
    B = np.zeros((size, size), np.float32)
    for i in range(size):
        for a in range(BLUR_K):
            t = i + a - half
            if t < 0:
                t = -t                          # reflect (no edge repeat)
            if t > size - 1:
                t = 2 * (size - 1) - t
            B[i, t] += k1[a]
    return B


# ---------------------------------------------------------------------------
# Fused kernel: resample -> per-pixel seg head -> face test -> Gaussian blur.
# One grid step = one batch element.
# ---------------------------------------------------------------------------
def _face_mask_kernel(w_ref, b_ref, ry_ref, rxt_ref, bm_ref, bmt_ref, x_ref, o_ref):
    # w_ref  (33,) SMEM : std-folded head weights, layout w[c*NUM_CLASSES + k]
    # b_ref  (11,) SMEM : mean-folded head bias
    # ry_ref (S, H), rxt_ref (W, S) : fused bilinear->nearest resample matrices
    # bm_ref / bmt_ref (S, S)       : reflect-padded 5-tap Gaussian matrix and its T
    # x_ref  (1, C, H, W)           : one normalized input image
    # o_ref  (1, 1, S, S)           : blurred face mask
    ry = ry_ref[...]
    rxt = rxt_ref[...]
    x = x_ref[...]

    def resample(c):                                   # channel c at the kept coords
        t = jnp.dot(x[0, c], rxt, preferred_element_type=jnp.float32)   # (H, S)
        return jnp.dot(ry, t, preferred_element_type=jnp.float32)       # (S, S)

    r0 = resample(0)
    r1 = resample(1)
    r2 = resample(2)

    def logit(k):                                      # per-pixel linear head, class k
        return (r0 * w_ref[k]
                + r1 * w_ref[NUM_CLASSES + k]
                + r2 * w_ref[2 * NUM_CLASSES + k]
                + b_ref[k])

    l_bg0 = logit(0)
    m_face = logit(1)
    for k in range(2, 10):
        m_face = jnp.maximum(m_face, logit(k))
    l_bg10 = logit(10)
    # argmax(logits) in {1..9}  <=>  max(logits[1..9]) > logits[0]  and  >= logits[10]
    # (first-occurrence tie-breaking, matching torch .max(1)[1]; no index tracking).
    face = ((m_face > l_bg0) & (m_face >= l_bg10)).astype(jnp.float32)   # (S, S)

    blurred = jnp.dot(
        jnp.dot(bm_ref[...], face, preferred_element_type=jnp.float32),
        bmt_ref[...], preferred_element_type=jnp.float32)
    o_ref[...] = blurred.reshape(o_ref.shape)


# ---------------------------------------------------------------------------
# Full forward pass (equivalent of FaceImage.forward / get_mask)
# ---------------------------------------------------------------------------
def face_image_forward(I, seg_w, seg_b):
    """I: (B, 3, H, W) normalized image; seg_w (3, 11), seg_b (1, 11).
    Returns the blurred face mask (B, 1, size, size), size = W."""
    B, C, H, W = I.shape
    assert C == NUM_CHANNELS
    size = W

    # Fold unnormalize (x*std + mean per channel) into the head: each resample-matrix
    # row sums to 1, so resample(x*std + mean) = resample(x)*std + mean, hence
    #   logits = resample(x) @ (diag(std) @ w) + (mean @ w + b).
    std = jnp.asarray(IMAGENET_STD)
    mean = jnp.asarray(IMAGENET_MEAN)
    w_flat = (seg_w * std[:, None]).reshape(-1)               # (33,), layout [c*11 + k]
    b_eff = mean @ seg_w + seg_b.reshape(-1)                  # (11,)

    # TODO(synk): the real segmentation_net is a TorchScript FaRL face-parsing model;
    # it is replaced by a synthetic per-pixel linear (1x1 conv) head of matching I/O.
    # The resample-before-head restructuring is only valid for such a per-pixel head.

    ry = jnp.asarray(_resample_matrix(H, size))               # (S, H)
    rxt = jnp.asarray(_resample_matrix(W, size).T)            # (W, S)
    k1 = _gaussian_kernel1d(BLUR_K, BLUR_SIGMA)
    bm_np = _blur_matrix(size, k1)
    bm = jnp.asarray(bm_np)
    bmt = jnp.asarray(bm_np.T)

    return pl.pallas_call(
        _face_mask_kernel,
        out_shape=jax.ShapeDtypeStruct((B, 1, size, size), jnp.float32),
        grid=(B,),
        in_specs=[
            pl.BlockSpec(memory_space=pltpu.MemorySpace.SMEM),     # w_flat (33,)
            pl.BlockSpec(memory_space=pltpu.MemorySpace.SMEM),     # b_eff (11,)
            pl.BlockSpec((size, H), lambda b: (0, 0)),             # ry
            pl.BlockSpec((W, size), lambda b: (0, 0)),             # rx^T
            pl.BlockSpec((size, size), lambda b: (0, 0)),          # blur matrix
            pl.BlockSpec((size, size), lambda b: (0, 0)),          # blur matrix^T
            pl.BlockSpec((1, C, H, W), lambda b: (b, 0, 0, 0)),    # image
        ],
        out_specs=pl.BlockSpec((1, 1, size, size), lambda b: (b, 0, 0, 0)),
        compiler_params=pltpu.CompilerParams(
            dimension_semantics=("parallel",)),                    # B steps -> both v7x TCs
    )(w_flat, b_eff, ry, rxt, bm, bmt, I)


if __name__ == "__main__":
    key = jax.random.PRNGKey(0)
    k_img, k_w, k_b = jax.random.split(key, 3)
    B, C, H, W = 2, 3, 16, 16
    I = jax.random.normal(k_img, (B, C, H, W), dtype=jnp.float32)
    # deterministic synthetic segmentation-head parameters (3 -> 11 classes)
    seg_w = 0.5 * jax.random.normal(k_w, (C, NUM_CLASSES), dtype=jnp.float32)
    seg_b = 0.1 * jax.random.normal(k_b, (1, NUM_CLASSES), dtype=jnp.float32)

    out = jax.jit(face_image_forward)(I, seg_w, seg_b)
    out = jax.block_until_ready(out)
    assert out.shape == (B, 1, H, W) and out.dtype == jnp.float32
    print("KERNEL_OK")
</pallas_src>

<mosaic_0001>
module attributes {stable_mosaic.version = 11 : i64} {
  func.func @_face_mask_kernel(%arg0: i32, %arg1: memref<33xf32, #tpu.memory_space<smem>>, %arg2: memref<11xf32, #tpu.memory_space<smem>>, %arg3: memref<16x16xf32, #tpu.memory_space<vmem>>, %arg4: memref<16x16xf32, #tpu.memory_space<vmem>>, %arg5: memref<16x16xf32, #tpu.memory_space<vmem>>, %arg6: memref<16x16xf32, #tpu.memory_space<vmem>>, %arg7: memref<1x3x16x16xf32, #tpu.memory_space<vmem>>, %arg8: memref<1x1x16x16xf32, #tpu.memory_space<vmem>>) attributes {dimension_semantics = [#tpu.dimension_semantics<parallel>], iteration_bounds = array<i64: 2>, scalar_prefetch = 0 : i64, scratch_operands = 0 : i64, tpu.core_type = #tpu.core_type<tc>, window_params = [{transform_indices = @transform_0, window_bounds = array<i64: 33>}, {transform_indices = @transform_1, window_bounds = array<i64: 11>}, {pipeline_mode = #tpu.pipeline_mode<synchronous>, transform_indices = @transform_2, window_bounds = array<i64: 16, 16>}, {pipeline_mode = #tpu.pipeline_mode<synchronous>, transform_indices = @transform_3, window_bounds = array<i64: 16, 16>}, {pipeline_mode = #tpu.pipeline_mode<synchronous>, transform_indices = @transform_4, window_bounds = array<i64: 16, 16>}, {pipeline_mode = #tpu.pipeline_mode<synchronous>, transform_indices = @transform_5, window_bounds = array<i64: 16, 16>}, {transform_indices = @transform_6, window_bounds = array<i64: 1, 3, 16, 16>}, {transform_indices = @transform_7, window_bounds = array<i64: 1, 1, 16, 16>}]} {
    %c0 = arith.constant 0 : index
    %c0_0 = arith.constant 0 : index
    %0 = vector.load %arg3[%c0, %c0_0] : memref<16x16xf32, #tpu.memory_space<vmem>>, vector<16x16xf32>
    %c0_1 = arith.constant 0 : index
    %c0_2 = arith.constant 0 : index
    %1 = vector.load %arg4[%c0_1, %c0_2] : memref<16x16xf32, #tpu.memory_space<vmem>>, vector<16x16xf32>
    %c0_3 = arith.constant 0 : index
    %c0_4 = arith.constant 0 : index
    %c0_5 = arith.constant 0 : index
    %c0_6 = arith.constant 0 : index
    %2 = vector.load %arg7[%c0_3, %c0_4, %c0_5, %c0_6] : memref<1x3x16x16xf32, #tpu.memory_space<vmem>>, vector<1x3x16x16xf32>
    %3 = vector.extract_strided_slice %2 {offsets = [0, 0, 0, 0], sizes = [1, 1, 16, 16], strides = [1, 1, 1, 1]} : vector<1x3x16x16xf32> to vector<1x1x16x16xf32>
    %4 = vector.shape_cast %3 : vector<1x1x16x16xf32> to vector<16x16xf32>
    %cst = arith.constant dense<0.000000e+00> : vector<16x16xf32>
    %5 = tpu.matmul %4, %1, %cst {dimension_numbers = #tpu.dot_dimension_numbers<[1], [0], [0], [1], [0, 0, 1, 1], [], []>} : vector<16x16xf32>, vector<16x16xf32>, vector<16x16xf32> -> vector<16x16xf32>
    %cst_7 = arith.constant dense<0.000000e+00> : vector<16x16xf32>
    %6 = tpu.matmul %0, %5, %cst_7 {dimension_numbers = #tpu.dot_dimension_numbers<[1], [0], [0], [1], [0, 0, 1, 1], [], []>} : vector<16x16xf32>, vector<16x16xf32>, vector<16x16xf32> -> vector<16x16xf32>
    %7 = vector.extract_strided_slice %2 {offsets = [0, 1, 0, 0], sizes = [1, 1, 16, 16], strides = [1, 1, 1, 1]} : vector<1x3x16x16xf32> to vector<1x1x16x16xf32>
    %8 = vector.shape_cast %7 : vector<1x1x16x16xf32> to vector<16x16xf32>
    %cst_8 = arith.constant dense<0.000000e+00> : vector<16x16xf32>
    %9 = tpu.matmul %8, %1, %cst_8 {dimension_numbers = #tpu.dot_dimension_numbers<[1], [0], [0], [1], [0, 0, 1, 1], [], []>} : vector<16x16xf32>, vector<16x16xf32>, vector<16x16xf32> -> vector<16x16xf32>
    %cst_9 = arith.constant dense<0.000000e+00> : vector<16x16xf32>
    %10 = tpu.matmul %0, %9, %cst_9 {dimension_numbers = #tpu.dot_dimension_numbers<[1], [0], [0], [1], [0, 0, 1, 1], [], []>} : vector<16x16xf32>, vector<16x16xf32>, vector<16x16xf32> -> vector<16x16xf32>
    %11 = vector.extract_strided_slice %2 {offsets = [0, 2, 0, 0], sizes = [1, 1, 16, 16], strides = [1, 1, 1, 1]} : vector<1x3x16x16xf32> to vector<1x1x16x16xf32>
    %12 = vector.shape_cast %11 : vector<1x1x16x16xf32> to vector<16x16xf32>
    %cst_10 = arith.constant dense<0.000000e+00> : vector<16x16xf32>
    %13 = tpu.matmul %12, %1, %cst_10 {dimension_numbers = #tpu.dot_dimension_numbers<[1], [0], [0], [1], [0, 0, 1, 1], [], []>} : vector<16x16xf32>, vector<16x16xf32>, vector<16x16xf32> -> vector<16x16xf32>
    %cst_11 = arith.constant dense<0.000000e+00> : vector<16x16xf32>
    %14 = tpu.matmul %0, %13, %cst_11 {dimension_numbers = #tpu.dot_dimension_numbers<[1], [0], [0], [1], [0, 0, 1, 1], [], []>} : vector<16x16xf32>, vector<16x16xf32>, vector<16x16xf32> -> vector<16x16xf32>
    %c0_12 = arith.constant 0 : index
    %15 = memref.load %arg1[%c0_12] : memref<33xf32, #tpu.memory_space<smem>>
    %16 = vector.broadcast %15 : f32 to vector<16x16xf32>
    %17 = arith.mulf %6, %16 : vector<16x16xf32>
    %c11 = arith.constant 11 : index
    %18 = memref.load %arg1[%c11] : memref<33xf32, #tpu.memory_space<smem>>
    %19 = vector.broadcast %18 : f32 to vector<16x16xf32>
    %20 = arith.mulf %10, %19 : vector<16x16xf32>
    %21 = arith.addf %17, %20 : vector<16x16xf32>
    %c22 = arith.constant 22 : index
    %22 = memref.load %arg1[%c22] : memref<33xf32, #tpu.memory_space<smem>>
    %23 = vector.broadcast %22 : f32 to vector<16x16xf32>
    %24 = arith.mulf %14, %23 : vector<16x16xf32>
    %25 = arith.addf %21, %24 : vector<16x16xf32>
    %c0_13 = arith.constant 0 : index
    %26 = memref.load %arg2[%c0_13] : memref<11xf32, #tpu.memory_space<smem>>
    %27 = vector.broadcast %26 : f32 to vector<16x16xf32>
    %28 = arith.addf %25, %27 : vector<16x16xf32>
    %c1 = arith.constant 1 : index
    %29 = memref.load %arg1[%c1] : memref<33xf32, #tpu.memory_space<smem>>
    %30 = vector.broadcast %29 : f32 to vector<16x16xf32>
    %31 = arith.mulf %6, %30 : vector<16x16xf32>
    %c12 = arith.constant 12 : index
    %32 = memref.load %arg1[%c12] : memref<33xf32, #tpu.memory_space<smem>>
    %33 = vector.broadcast %32 : f32 to vector<16x16xf32>
    %34 = arith.mulf %10, %33 : vector<16x16xf32>
    %35 = arith.addf %31, %34 : vector<16x16xf32>
    %c23 = arith.constant 23 : index
    %36 = memref.load %arg1[%c23] : memref<33xf32, #tpu.memory_space<smem>>
    %37 = vector.broadcast %36 : f32 to vector<16x16xf32>
    %38 = arith.mulf %14, %37 : vector<16x16xf32>
    %39 = arith.addf %35, %38 : vector<16x16xf32>
    %c1_14 = arith.constant 1 : index
    %40 = memref.load %arg2[%c1_14] : memref<11xf32, #tpu.memory_space<smem>>
    %41 = vector.broadcast %40 : f32 to vector<16x16xf32>
    %42 = arith.addf %39, %41 : vector<16x16xf32>
    %c2 = arith.constant 2 : index
    %43 = memref.load %arg1[%c2] : memref<33xf32, #tpu.memory_space<smem>>
    %44 = vector.broadcast %43 : f32 to vector<16x16xf32>
    %45 = arith.mulf %6, %44 : vector<16x16xf32>
    %c13 = arith.constant 13 : index
    %46 = memref.load %arg1[%c13] : memref<33xf32, #tpu.memory_space<smem>>
    %47 = vector.broadcast %46 : f32 to vector<16x16xf32>
    %48 = arith.mulf %10, %47 : vector<16x16xf32>
    %49 = arith.addf %45, %48 : vector<16x16xf32>
    %c24 = arith.constant 24 : index
    %50 = memref.load %arg1[%c24] : memref<33xf32, #tpu.memory_space<smem>>
    %51 = vector.broadcast %50 : f32 to vector<16x16xf32>
    %52 = arith.mulf %14, %51 : vector<16x16xf32>
    %53 = arith.addf %49, %52 : vector<16x16xf32>
    %c2_15 = arith.constant 2 : index
    %54 = memref.load %arg2[%c2_15] : memref<11xf32, #tpu.memory_space<smem>>
    %55 = vector.broadcast %54 : f32 to vector<16x16xf32>
    %56 = arith.addf %53, %55 : vector<16x16xf32>
    %57 = arith.maximumf %42, %56 : vector<16x16xf32>
    %c3 = arith.constant 3 : index
    %58 = memref.load %arg1[%c3] : memref<33xf32, #tpu.memory_space<smem>>
    %59 = vector.broadcast %58 : f32 to vector<16x16xf32>
    %60 = arith.mulf %6, %59 : vector<16x16xf32>
    %c14 = arith.constant 14 : index
    %61 = memref.load %arg1[%c14] : memref<33xf32, #tpu.memory_space<smem>>
    %62 = vector.broadcast %61 : f32 to vector<16x16xf32>
    %63 = arith.mulf %10, %62 : vector<16x16xf32>
    %64 = arith.addf %60, %63 : vector<16x16xf32>
    %c25 = arith.constant 25 : index
    %65 = memref.load %arg1[%c25] : memref<33xf32, #tpu.memory_space<smem>>
    %66 = vector.broadcast %65 : f32 to vector<16x16xf32>
    %67 = arith.mulf %14, %66 : vector<16x16xf32>
    %68 = arith.addf %64, %67 : vector<16x16xf32>
    %c3_16 = arith.constant 3 : index
    %69 = memref.load %arg2[%c3_16] : memref<11xf32, #tpu.memory_space<smem>>
    %70 = vector.broadcast %69 : f32 to vector<16x16xf32>
    %71 = arith.addf %68, %70 : vector<16x16xf32>
    %72 = arith.maximumf %57, %71 : vector<16x16xf32>
    %c4 = arith.constant 4 : index
    %73 = memref.load %arg1[%c4] : memref<33xf32, #tpu.memory_space<smem>>
    %74 = vector.broadcast %73 : f32 to vector<16x16xf32>
    %75 = arith.mulf %6, %74 : vector<16x16xf32>
    %c15 = arith.constant 15 : index
    %76 = memref.load %arg1[%c15] : memref<33xf32, #tpu.memory_space<smem>>
    %77 = vector.broadcast %76 : f32 to vector<16x16xf32>
    %78 = arith.mulf %10, %77 : vector<16x16xf32>
    %79 = arith.addf %75, %78 : vector<16x16xf32>
    %c26 = arith.constant 26 : index
    %80 = memref.load %arg1[%c26] : memref<33xf32, #tpu.memory_space<smem>>
    %81 = vector.broadcast %80 : f32 to vector<16x16xf32>
    %82 = arith.mulf %14, %81 : vector<16x16xf32>
    %83 = arith.addf %79, %82 : vector<16x16xf32>
    %c4_17 = arith.constant 4 : index
    %84 = memref.load %arg2[%c4_17] : memref<11xf32, #tpu.memory_space<smem>>
    %85 = vector.broadcast %84 : f32 to vector<16x16xf32>
    %86 = arith.addf %83, %85 : vector<16x16xf32>
    %87 = arith.maximumf %72, %86 : vector<16x16xf32>
    %c5 = arith.constant 5 : index
    %88 = memref.load %arg1[%c5] : memref<33xf32, #tpu.memory_space<smem>>
    %89 = vector.broadcast %88 : f32 to vector<16x16xf32>
    %90 = arith.mulf %6, %89 : vector<16x16xf32>
    %c16 = arith.constant 16 : index
    %91 = memref.load %arg1[%c16] : memref<33xf32, #tpu.memory_space<smem>>
    %92 = vector.broadcast %91 : f32 to vector<16x16xf32>
    %93 = arith.mulf %10, %92 : vector<16x16xf32>
    %94 = arith.addf %90, %93 : vector<16x16xf32>
    %c27 = arith.constant 27 : index
    %95 = memref.load %arg1[%c27] : memref<33xf32, #tpu.memory_space<smem>>
    %96 = vector.broadcast %95 : f32 to vector<16x16xf32>
    %97 = arith.mulf %14, %96 : vector<16x16xf32>
    %98 = arith.addf %94, %97 : vector<16x16xf32>
    %c5_18 = arith.constant 5 : index
    %99 = memref.load %arg2[%c5_18] : memref<11xf32, #tpu.memory_space<smem>>
    %100 = vector.broadcast %99 : f32 to vector<16x16xf32>
    %101 = arith.addf %98, %100 : vector<16x16xf32>
    %102 = arith.maximumf %87, %101 : vector<16x16xf32>
    %c6 = arith.constant 6 : index
    %103 = memref.load %arg1[%c6] : memref<33xf32, #tpu.memory_space<smem>>
    %104 = vector.broadcast %103 : f32 to vector<16x16xf32>
    %105 = arith.mulf %6, %104 : vector<16x16xf32>
    %c17 = arith.constant 17 : index
    %106 = memref.load %arg1[%c17] : memref<33xf32, #tpu.memory_space<smem>>
    %107 = vector.broadcast %106 : f32 to vector<16x16xf32>
    %108 = arith.mulf %10, %107 : vector<16x16xf32>
    %109 = arith.addf %105, %108 : vector<16x16xf32>
    %c28 = arith.constant 28 : index
    %110 = memref.load %arg1[%c28] : memref<33xf32, #tpu.memory_space<smem>>
    %111 = vector.broadcast %110 : f32 to vector<16x16xf32>
    %112 = arith.mulf %14, %111 : vector<16x16xf32>
    %113 = arith.addf %109, %112 : vector<16x16xf32>
    %c6_19 = arith.constant 6 : index
    %114 = memref.load %arg2[%c6_19] : memref<11xf32, #tpu.memory_space<smem>>
    %115 = vector.broadcast %114 : f32 to vector<16x16xf32>
    %116 = arith.addf %113, %115 : vector<16x16xf32>
    %117 = arith.maximumf %102, %116 : vector<16x16xf32>
    %c7 = arith.constant 7 : index
    %118 = memref.load %arg1[%c7] : memref<33xf32, #tpu.memory_space<smem>>
    %119 = vector.broadcast %118 : f32 to vector<16x16xf32>
    %120 = arith.mulf %6, %119 : vector<16x16xf32>
    %c18 = arith.constant 18 : index
    %121 = memref.load %arg1[%c18] : memref<33xf32, #tpu.memory_space<smem>>
    %122 = vector.broadcast %121 : f32 to vector<16x16xf32>
    %123 = arith.mulf %10, %122 : vector<16x16xf32>
    %124 = arith.addf %120, %123 : vector<16x16xf32>
    %c29 = arith.constant 29 : index
    %125 = memref.load %arg1[%c29] : memref<33xf32, #tpu.memory_space<smem>>
    %126 = vector.broadcast %125 : f32 to vector<16x16xf32>
    %127 = arith.mulf %14, %126 : vector<16x16xf32>
    %128 = arith.addf %124, %127 : vector<16x16xf32>
    %c7_20 = arith.constant 7 : index
    %129 = memref.load %arg2[%c7_20] : memref<11xf32, #tpu.memory_space<smem>>
    %130 = vector.broadcast %129 : f32 to vector<16x16xf32>
    %131 = arith.addf %128, %130 : vector<16x16xf32>
    %132 = arith.maximumf %117, %131 : vector<16x16xf32>
    %c8 = arith.constant 8 : index
    %133 = memref.load %arg1[%c8] : memref<33xf32, #tpu.memory_space<smem>>
    %134 = vector.broadcast %133 : f32 to vector<16x16xf32>
    %135 = arith.mulf %6, %134 : vector<16x16xf32>
    %c19 = arith.constant 19 : index
    %136 = memref.load %arg1[%c19] : memref<33xf32, #tpu.memory_space<smem>>
    %137 = vector.broadcast %136 : f32 to vector<16x16xf32>
    %138 = arith.mulf %10, %137 : vector<16x16xf32>
    %139 = arith.addf %135, %138 : vector<16x16xf32>
    %c30 = arith.constant 30 : index
    %140 = memref.load %arg1[%c30] : memref<33xf32, #tpu.memory_space<smem>>
    %141 = vector.broadcast %140 : f32 to vector<16x16xf32>
    %142 = arith.mulf %14, %141 : vector<16x16xf32>
    %143 = arith.addf %139, %142 : vector<16x16xf32>
    %c8_21 = arith.constant 8 : index
    %144 = memref.load %arg2[%c8_21] : memref<11xf32, #tpu.memory_space<smem>>
    %145 = vector.broadcast %144 : f32 to vector<16x16xf32>
    %146 = arith.addf %143, %145 : vector<16x16xf32>
    %147 = arith.maximumf %132, %146 : vector<16x16xf32>
    %c9 = arith.constant 9 : index
    %148 = memref.load %arg1[%c9] : memref<33xf32, #tpu.memory_space<smem>>
    %149 = vector.broadcast %148 : f32 to vector<16x16xf32>
    %150 = arith.mulf %6, %149 : vector<16x16xf32>
    %c20 = arith.constant 20 : index
    %151 = memref.load %arg1[%c20] : memref<33xf32, #tpu.memory_space<smem>>
    %152 = vector.broadcast %151 : f32 to vector<16x16xf32>
    %153 = arith.mulf %10, %152 : vector<16x16xf32>
    %154 = arith.addf %150, %153 : vector<16x16xf32>
    %c31 = arith.constant 31 : index
    %155 = memref.load %arg1[%c31] : memref<33xf32, #tpu.memory_space<smem>>
    %156 = vector.broadcast %155 : f32 to vector<16x16xf32>
    %157 = arith.mulf %14, %156 : vector<16x16xf32>
    %158 = arith.addf %154, %157 : vector<16x16xf32>
    %c9_22 = arith.constant 9 : index
    %159 = memref.load %arg2[%c9_22] : memref<11xf32, #tpu.memory_space<smem>>
    %160 = vector.broadcast %159 : f32 to vector<16x16xf32>
    %161 = arith.addf %158, %160 : vector<16x16xf32>
    %162 = arith.maximumf %147, %161 : vector<16x16xf32>
    %c10 = arith.constant 10 : index
    %163 = memref.load %arg1[%c10] : memref<33xf32, #tpu.memory_space<smem>>
    %164 = vector.broadcast %163 : f32 to vector<16x16xf32>
    %165 = arith.mulf %6, %164 : vector<16x16xf32>
    %c21 = arith.constant 21 : index
    %166 = memref.load %arg1[%c21] : memref<33xf32, #tpu.memory_space<smem>>
    %167 = vector.broadcast %166 : f32 to vector<16x16xf32>
    %168 = arith.mulf %10, %167 : vector<16x16xf32>
    %169 = arith.addf %165, %168 : vector<16x16xf32>
    %c32 = arith.constant 32 : index
    %170 = memref.load %arg1[%c32] : memref<33xf32, #tpu.memory_space<smem>>
    %171 = vector.broadcast %170 : f32 to vector<16x16xf32>
    %172 = arith.mulf %14, %171 : vector<16x16xf32>
    %173 = arith.addf %169, %172 : vector<16x16xf32>
    %c10_23 = arith.constant 10 : index
    %174 = memref.load %arg2[%c10_23] : memref<11xf32, #tpu.memory_space<smem>>
    %175 = vector.broadcast %174 : f32 to vector<16x16xf32>
    %176 = arith.addf %173, %175 : vector<16x16xf32>
    %177 = arith.cmpf ogt, %162, %28 : vector<16x16xf32>
    %178 = arith.cmpf oge, %162, %176 : vector<16x16xf32>
    %179 = arith.andi %177, %178 : vector<16x16xi1>
    %180 = arith.extui %179 : vector<16x16xi1> to vector<16x16xi32>
    %181 = arith.sitofp %180 : vector<16x16xi32> to vector<16x16xf32>
    %c0_24 = arith.constant 0 : index
    %c0_25 = arith.constant 0 : index
    %182 = vector.load %arg5[%c0_24, %c0_25] : memref<16x16xf32, #tpu.memory_space<vmem>>, vector<16x16xf32>
    %cst_26 = arith.constant dense<0.000000e+00> : vector<16x16xf32>
    %183 = tpu.matmul %182, %181, %cst_26 {dimension_numbers = #tpu.dot_dimension_numbers<[1], [0], [0], [1], [0, 0, 1, 1], [], []>} : vector<16x16xf32>, vector<16x16xf32>, vector<16x16xf32> -> vector<16x16xf32>
    %c0_27 = arith.constant 0 : index
    %c0_28 = arith.constant 0 : index
    %184 = vector.load %arg6[%c0_27, %c0_28] : memref<16x16xf32, #tpu.memory_space<vmem>>, vector<16x16xf32>
    %cst_29 = arith.constant dense<0.000000e+00> : vector<16x16xf32>
    %185 = tpu.matmul %183, %184, %cst_29 {dimension_numbers = #tpu.dot_dimension_numbers<[1], [0], [0], [1], [0, 0, 1, 1], [], []>} : vector<16x16xf32>, vector<16x16xf32>, vector<16x16xf32> -> vector<16x16xf32>
    %186 = vector.shape_cast %185 : vector<16x16xf32> to vector<1x1x16x16xf32>
    %c0_30 = arith.constant 0 : index
    %c0_31 = arith.constant 0 : index
    %c0_32 = arith.constant 0 : index
    %c0_33 = arith.constant 0 : index
    %187 = vector.load %arg8[%c0_30, %c0_31, %c0_32, %c0_33] : memref<1x1x16x16xf32, #tpu.memory_space<vmem>>, vector<1x1x16x16xf32>
    tpu.vector_store %arg8[%c0_30, %c0_31, %c0_32, %c0_33], %186 {strides = array<i32>} : memref<1x1x16x16xf32, #tpu.memory_space<vmem>>, vector<1x1x16x16xf32>,
    return
  }
  func.func @transform_0(%arg0: i32) -> i32 {
    %c0_i32 = arith.constant 0 : i32
    %c0_i32_0 = arith.constant 0 : i32
    return %c0_i32 : i32
  }
  func.func @transform_1(%arg0: i32) -> i32 {
    %c0_i32 = arith.constant 0 : i32
    %c0_i32_0 = arith.constant 0 : i32
    return %c0_i32 : i32
  }
  func.func @transform_2(%arg0: i32) -> (i32, i32) {
    %c0_i32 = arith.constant 0 : i32
    %c0_i32_0 = arith.constant 0 : i32
    %c0_i32_1 = arith.constant 0 : i32
    return %c0_i32, %c0_i32_0 : i32, i32
  }
  func.func @transform_3(%arg0: i32) -> (i32, i32) {
    %c0_i32 = arith.constant 0 : i32
    %c0_i32_0 = arith.constant 0 : i32
    %c0_i32_1 = arith.constant 0 : i32
    return %c0_i32, %c0_i32_0 : i32, i32
  }
  func.func @transform_4(%arg0: i32) -> (i32, i32) {
    %c0_i32 = arith.constant 0 : i32
    %c0_i32_0 = arith.constant 0 : i32
    %c0_i32_1 = arith.constant 0 : i32
    return %c0_i32, %c0_i32_0 : i32, i32
  }
  func.func @transform_5(%arg0: i32) -> (i32, i32) {
    %c0_i32 = arith.constant 0 : i32
    %c0_i32_0 = arith.constant 0 : i32
    %c0_i32_1 = arith.constant 0 : i32
    return %c0_i32, %c0_i32_0 : i32, i32
  }
  func.func @transform_6(%arg0: i32) -> (i32, i32, i32, i32) {
    %c0_i32 = arith.constant 0 : i32
    %c0_i32_0 = arith.constant 0 : i32
    %c0_i32_1 = arith.constant 0 : i32
    %c0_i32_2 = arith.constant 0 : i32
    return %arg0, %c0_i32, %c0_i32_0, %c0_i32_1 : i32, i32, i32, i32
  }
  func.func @transform_7(%arg0: i32) -> (i32, i32, i32, i32) {
    %c0_i32 = arith.constant 0 : i32
    %c0_i32_0 = arith.constant 0 : i32
    %c0_i32_1 = arith.constant 0 : i32
    %c0_i32_2 = arith.constant 0 : i32
    return %arg0, %c0_i32, %c0_i32_0, %c0_i32_1 : i32, i32, i32, i32
  }
}

</mosaic_0001>

<llo_original>
// kernel: face_image_forward.1
$region0: #{face_image_forward.1}
  #allocation0 [shape = 'u32[]', space=smem, size = 0x4, offset = 0x4, fixed_abs, tag = 'smem constant byte address 0x4 - core index']
  #allocation1 [shape = 'u32[144,128]{1,0:T(1,128)}', space=vmem, size = 0x12000, scoped, tag = 'internal scratch']
  %s0 = inlined_call_operand.vmem [shape: f32[33], index: 0, kind: input, shape index: {}]
  %s1 = inlined_call_operand.vmem [shape: f32[11], index: 1, kind: input, shape index: {}]
  %s2 = inlined_call_operand.hbm [shape: f32[16,16], index: 2, kind: input, shape index: {}]
  %s3 = inlined_call_operand.hbm [shape: f32[16,16], index: 3, kind: input, shape index: {}]
  %s4 = inlined_call_operand.vmem [shape: f32[16,16], index: 4, kind: input, shape index: {}]
  %s5 = inlined_call_operand.vmem [shape: f32[16,16], index: 5, kind: input, shape index: {}]
  %s6 = inlined_call_operand.hbm [shape: f32[2,3,16,16], index: 6, kind: input, shape index: {}]
  %s7 = inlined_call_operand.hbm [shape: f32[2,1,16,16], index: 7, kind: output, shape index: {}]
  %s8 = sld [smem:[#allocation0]]
  $region81: #{face_image_forward.1} parent=0
    _
  %s10 = ssub.s32 1, %s8
  %s11 = scalar_select 0, %s10, %s8
  $region1: #{face_image_forward.1} parent=0
    #allocation2 [shape = 'u8[512]{0}', space=smem, size = 0x200, scoped, tag = 'input window, operand 0, single buffered']
    #allocation3 [shape = 's32[2]{0}', space=sflag, size = 0x8, scoped, tag = 'scoped memory for face_image_forward.1']
    #allocation4 [shape = 's32[2]{0}', space=sflag, size = 0x8, scoped, tag = 'scoped memory for face_image_forward.1']
    #allocation5 [shape = 's32[2]{0}', space=sflag, size = 0x8, scoped, tag = 'scoped memory for face_image_forward.1']
    #allocation6 [shape = 'u8[512]{0}', space=smem, size = 0x200, scoped, tag = 'input window, operand 1, single buffered']
    #allocation7 [shape = 's32[1]{0}', space=sflag, size = 0x4, scoped, tag = 'scoped memory for face_image_forward.1']
    #allocation8 [shape = 'u8[8192]{0}', space=vmem, size = 0x2000, scoped, tag = 'input window, operand 2, single buffered']
    #allocation9 [shape = 'u8[8192]{0}', space=vmem, size = 0x2000, scoped, tag = 'input window, operand 3, single buffered']
    #allocation10 [shape = 's32[1]{0}', space=sflag, size = 0x4, scoped, tag = 'scoped memory for face_image_forward.1']
    #allocation11 [shape = 'u8[49152]{0}', space=vmem, size = 0xc000, scoped, tag = 'input window, operand 6']
    #allocation12 [shape = 'u8[16384]{0}', space=vmem, size = 0x4000, scoped, tag = 'output window, operand 0']
    %12 = vsyncpa [#allocation5], 0
    %13 = vsyncpa [#allocation7], 0
    %14 = vsyncpa [#allocation3], 0
    %15 = vsyncpa [#allocation10], 0
    %16 = vsyncpa [#allocation4], 0
    %s17 = scalar_lea.sflag [#allocation4], 1
    %18 = vsyncpa %s17, 0
    loop: start=0, step=1, limit=4
    $region2: #{face_image_forward.1} parent=1 // loop_pre_header
      _
    $region3: #{face_image_forward.1} parent=1 // loop_header
      %s20 = sphi 0, %s24
      %p21 = scmp.ge.s32.totalorder %s20, 4
      %s28 = sphi 0, %s28
      %s30 = sphi 0, %s28
      %s31 = sphi 0, %s30
      %s45 = sphi 0, %s31
      %s49 = sphi 0, %s49
      %s51 = sphi 0, %s49
      %s52 = sphi 0, %s51
      %s66 = sphi 0, %s52
      %s70 = sphi 0, %s70
      %s72 = sphi 0, %s70
      %s73 = sphi 0, %s72
      %s87 = sphi 0, %s73
      %s91 = sphi 0, %s91
      %s93 = sphi 0, %s91
      %s94 = sphi 0, %s93
      %s108 = sphi 0, %s94
      %s112 = sphi 0, %s112
      %s114 = sphi 0, %s112
      %s115 = sphi 0, %s114
      %s129 = sphi 0, %s115
      %s133 = sphi 0, %s133
      %s135 = sphi 0, %s133
      %s136 = sphi 0, %s135
      %s150 = sphi 0, %s136
      %s156 = sphi 0, %s158
      %s159 = sphi 0, %s156
      %s160 = sphi 0, %s159
      %s176 = sphi 0, %s160
      %s182 = sphi 0, %s184
      %s185 = sphi 0, %s182
      %s186 = sphi 0, %s185
      %s202 = sphi 0, %s186
    $region4: #{face_image_forward.1} parent=1 // loop_header_branch
      %23 = sbr.rel (%p21) target = $region8
    $region5: #{face_image_forward.1} parent=1 // loop_body
      %s25 = ssub.s32 %s20, 1
      %s26 = ssub.s32 %s20, 2
      %s27 = sadd.s32 %s20, 1
      %s29 = sadd.s32 %s28, 1
      %p32 = scmp.eq.s32.totalorder %s20, 1
      %p33 = scmp.ne.s32.totalorder %s28, %s30
      %p34 = scmp.eq.s32.totalorder %s20, 0
      %p35 = por %p33, %p34
      %p36 = scmp.ne.s32.totalorder %s28, %s30
      %p37 = scmp.eq.s32.totalorder %s25, 1
      %p38 = por %p36, %p37
      %p39 = scmp.ne.s32.totalorder %s30, %s31
      %p40 = scmp.eq.s32.totalorder %s25, 0
      %p41 = por %p39, %p40
      %p42 = scmp.ne.s32.totalorder %s30, %s31
      %p43 = scmp.eq.s32.totalorder %s26, 1
      %p44 = por %p42, %p43
      %p46 = scmp.ne.s32.totalorder %s31, %s45
      %p47 = scmp.eq.s32.totalorder %s26, 0
      %p48 = por %p46, %p47
      %s50 = sadd.s32 %s49, 1
      %p53 = scmp.eq.s32.totalorder %s20, 1
      %p54 = scmp.ne.s32.totalorder %s49, %s51
      %p55 = scmp.eq.s32.totalorder %s20, 0
      %p56 = por %p54, %p55
      %p57 = scmp.ne.s32.totalorder %s49, %s51
      %p58 = scmp.eq.s32.totalorder %s25, 1
      %p59 = por %p57, %p58
      %p60 = scmp.ne.s32.totalorder %s51, %s52
      %p61 = scmp.eq.s32.totalorder %s25, 0
      %p62 = por %p60, %p61
      %p63 = scmp.ne.s32.totalorder %s51, %s52
      %p64 = scmp.eq.s32.totalorder %s26, 1
      %p65 = por %p63, %p64
      %p67 = scmp.ne.s32.totalorder %s52, %s66
      %p68 = scmp.eq.s32.totalorder %s26, 0
      %p69 = por %p67, %p68
      %s71 = sadd.s32 %s70, 1
      %p74 = scmp.eq.s32.totalorder %s20, 1
      %p75 = scmp.ne.s32.totalorder %s70, %s72
      %p76 = scmp.eq.s32.totalorder %s20, 0
      %p77 = por %p75, %p76
      %p78 = scmp.ne.s32.totalorder %s70, %s72
      %p79 = scmp.eq.s32.totalorder %s25, 1
      %p80 = por %p78, %p79
      %p81 = scmp.ne.s32.totalorder %s72, %s73
      %p82 = scmp.eq.s32.totalorder %s25, 0
      %p83 = por %p81, %p82
      %p84 = scmp.ne.s32.totalorder %s72, %s73
      %p85 = scmp.eq.s32.totalorder %s26, 1
      %p86 = por %p84, %p85
      %p88 = scmp.ne.s32.totalorder %s73, %s87
      %p89 = scmp.eq.s32.totalorder %s26, 0
      %p90 = por %p88, %p89
      %s92 = sadd.s32 %s91, 1
      %p95 = scmp.eq.s32.totalorder %s20, 1
      %p96 = scmp.ne.s32.totalorder %s91, %s93
      %p97 = scmp.eq.s32.totalorder %s20, 0
      %p98 = por %p96, %p97
      %p99 = scmp.ne.s32.totalorder %s91, %s93
      %p100 = scmp.eq.s32.totalorder %s25, 1
      %p101 = por %p99, %p100
      %p102 = scmp.ne.s32.totalorder %s93, %s94
      %p103 = scmp.eq.s32.totalorder %s25, 0
      %p104 = por %p102, %p103
      %p105 = scmp.ne.s32.totalorder %s93, %s94
      %p106 = scmp.eq.s32.totalorder %s26, 1
      %p107 = por %p105, %p106
      %p109 = scmp.ne.s32.totalorder %s94, %s108
      %p110 = scmp.eq.s32.totalorder %s26, 0
      %p111 = por %p109, %p110
      %s113 = sadd.s32 %s112, 1
      %p116 = scmp.eq.s32.totalorder %s20, 1
      %p117 = scmp.ne.s32.totalorder %s112, %s114
      %p118 = scmp.eq.s32.totalorder %s20, 0
      %p119 = por %p117, %p118
      %p120 = scmp.ne.s32.totalorder %s112, %s114
      %p121 = scmp.eq.s32.totalorder %s25, 1
      %p122 = por %p120, %p121
      %p123 = scmp.ne.s32.totalorder %s114, %s115
      %p124 = scmp.eq.s32.totalorder %s25, 0
      %p125 = por %p123, %p124
      %p126 = scmp.ne.s32.totalorder %s114, %s115
      %p127 = scmp.eq.s32.totalorder %s26, 1
      %p128 = por %p126, %p127
      %p130 = scmp.ne.s32.totalorder %s115, %s129
      %p131 = scmp.eq.s32.totalorder %s26, 0
      %p132 = por %p130, %p131
      %s134 = sadd.s32 %s133, 1
      %p137 = scmp.eq.s32.totalorder %s20, 1
      %p138 = scmp.ne.s32.totalorder %s133, %s135
      %p139 = scmp.eq.s32.totalorder %s20, 0
      %p140 = por %p138, %p139
      %p141 = scmp.ne.s32.totalorder %s133, %s135
      %p142 = scmp.eq.s32.totalorder %s25, 1
      %p143 = por %p141, %p142
      %p144 = scmp.ne.s32.totalorder %s135, %s136
      %p145 = scmp.eq.s32.totalorder %s25, 0
      %p146 = por %p144, %p145
      %p147 = scmp.ne.s32.totalorder %s135, %s136
      %p148 = scmp.eq.s32.totalorder %s26, 1
      %p149 = por %p147, %p148
      %p151 = scmp.ne.s32.totalorder %s136, %s150
      %p152 = scmp.eq.s32.totalorder %s26, 0
      %p153 = por %p151, %p152
      %s154 = ssub.s32 %s20, %s27
      %p155 = scmp.eq.s32.totalorder %s154, 0
      %s157 = sadd.s32 %s156, 1
      %s158 = scalar_select %p155, %s156, %s157
      %p161 = pneg %p155
      %p162 = scmp.eq.s32.totalorder %s20, 1
      %p163 = por %p161, %p162
      %p164 = scmp.ne.s32.totalorder %s156, %s159
      %p165 = scmp.eq.s32.totalorder %s20, 0
      %p166 = por %p164, %p165
      %p167 = scmp.ne.s32.totalorder %s156, %s159
      %p168 = scmp.eq.s32.totalorder %s25, 1
      %p169 = por %p167, %p168
      %p170 = scmp.ne.s32.totalorder %s159, %s160
      %p171 = scmp.eq.s32.totalorder %s25, 0
      %p172 = por %p170, %p171
      %p173 = scmp.ne.s32.totalorder %s159, %s160
      %p174 = scmp.eq.s32.totalorder %s26, 1
      %p175 = por %p173, %p174
      %p177 = scmp.ne.s32.totalorder %s160, %s176
      %p178 = scmp.eq.s32.totalorder %s26, 0
      %p179 = por %p177, %p178
      %s180 = ssub.s32 %s20, %s27
      %p181 = scmp.eq.s32.totalorder %s180, 0
      %s183 = sadd.s32 %s182, 1
      %s184 = scalar_select %p181, %s182, %s183
      %p187 = pneg %p181
      %p188 = scmp.eq.s32.totalorder %s20, 1
      %p189 = por %p187, %p188
      %p190 = scmp.ne.s32.totalorder %s182, %s185
      %p191 = scmp.eq.s32.totalorder %s20, 0
      %p192 = por %p190, %p191
      %p193 = scmp.ne.s32.totalorder %s182, %s185
      %p194 = scmp.eq.s32.totalorder %s25, 1
      %p195 = por %p193, %p194
      %p196 = scmp.ne.s32.totalorder %s185, %s186
      %p197 = scmp.eq.s32.totalorder %s25, 0
      %p198 = por %p196, %p197
      %p199 = scmp.ne.s32.totalorder %s185, %s186
      %p200 = scmp.eq.s32.totalorder %s26, 1
      %p201 = por %p199, %p200
      %p203 = scmp.ne.s32.totalorder %s186, %s202
      %p204 = scmp.eq.s32.totalorder %s26, 0
      %p205 = por %p203, %p204
      %p206 = scmp.le.s32.totalorder 1, %s20
      %p207 = scmp.lt.s32.totalorder %s20, 3
      %p208 = pnand %p206, %p207
      %p209 = pneg %p208
      // Predicated region
      $region9: #{face_image_forward.1} parent=5 // pred_check
        _
      $region10: #{face_image_forward.1} parent=5 // pred_check_branch
        %211 = sbr.rel (%p208) target = $region12
      $region11: #{face_image_forward.1} parent=5 // pred_region
        %s212 = ssub.s32 %s20, 1
        // Predicated region
        $region13: #{face_image_forward.1} parent=11 // pred_check
          %p213 = pneg %p41
        $region14: #{face_image_forward.1} parent=11 // pred_check_branch
          %215 = sbr.rel (%p213) target = $region16
        $region15: #{face_image_forward.1} parent=11 // pred_region
          %s217 = ssub.s32 16, 16
          %218 = vsyncadd [#allocation5], %s217
          %s220 = sshll.u32 %s0, 4
          %s221 = int_to_ptr.vmem [resolvable:$true] %s220
          %223 = dma.vmem_to_smem %s221, 16, [#allocation2], [#allocation5]
        $region16: #{face_image_forward.1} parent=11 // pred_fallthru
          _
        // Predicated region
        $region17: #{face_image_forward.1} parent=11 // pred_check
          %p224 = pneg %p62
        $region18: #{face_image_forward.1} parent=11 // pred_check_branch
          %226 = sbr.rel (%p224) target = $region20
        $region19: #{face_image_forward.1} parent=11 // pred_region
          %s228 = ssub.s32 16, 16
          %229 = vsyncadd [#allocation7], %s228
          %s231 = sshll.u32 %s1, 4
          %s232 = int_to_ptr.vmem [resolvable:$true] %s231
          %234 = dma.vmem_to_smem %s232, 16, [#allocation6], [#allocation7]
        $region20: #{face_image_forward.1} parent=11 // pred_fallthru
          _
        // Predicated region
        $region21: #{face_image_forward.1} parent=11 // pred_check
          %p235 = pneg %p83
        $region22: #{face_image_forward.1} parent=11 // pred_check_branch
          %237 = sbr.rel (%p235) target = $region24
        $region23: #{face_image_forward.1} parent=11 // pred_region
          %s239 = ssub.s32 256, 256
          %240 = vsyncadd [#allocation3], %s239
          %s241 = sshll.u32 [#allocation8], 4
          %s242 = int_to_ptr.vmem [resolvable:$true] %s241
          %247 = dma.hbm_to_vmem [thread:$0]  %s2, 256, %s242, [#allocation3], 128, 128, 8
        $region24: #{face_image_forward.1} parent=11 // pred_fallthru
          _
        // Predicated region
        $region25: #{face_image_forward.1} parent=11 // pred_check
          %p248 = pneg %p104
        $region26: #{face_image_forward.1} parent=11 // pred_check_branch
          %250 = sbr.rel (%p248) target = $region28
        $region27: #{face_image_forward.1} parent=11 // pred_region
          %s252 = ssub.s32 256, 256
          %253 = vsyncadd [#allocation10], %s252
          %s254 = sshll.u32 [#allocation9], 4
          %s255 = int_to_ptr.vmem [resolvable:$true] %s254
          %260 = dma.hbm_to_vmem [thread:$0]  %s3, 256, %s255, [#allocation10], 128, 128, 8
        $region28: #{face_image_forward.1} parent=11 // pred_fallthru
          _
        // Predicated region
        $region29: #{face_image_forward.1} parent=11 // pred_check
          %p261 = pneg %p125
        $region30: #{face_image_forward.1} parent=11 // pred_check_branch
          %263 = sbr.rel (%p261) target = $region32
        $region31: #{face_image_forward.1} parent=11 // pred_region
          _
        $region32: #{face_image_forward.1} parent=11 // pred_fallthru
          _
        // Predicated region
        $region33: #{face_image_forward.1} parent=11 // pred_check
          %p264 = pneg %p146
        $region34: #{face_image_forward.1} parent=11 // pred_check_branch
          %266 = sbr.rel (%p264) target = $region36
        $region35: #{face_image_forward.1} parent=11 // pred_region
          _
        $region36: #{face_image_forward.1} parent=11 // pred_fallthru
          _
      $region12: #{face_image_forward.1} parent=5 // pred_fallthru
        _
      %p267 = scmp.lt.s32.totalorder %s20, 2
      // Predicated region
      $region37: #{face_image_forward.1} parent=5 // pred_check
        %p268 = pneg %p267
      $region38: #{face_image_forward.1} parent=5 // pred_check_branch
        %270 = sbr.rel (%p268) target = $region40
      $region39: #{face_image_forward.1} parent=5 // pred_region
        // Predicated region
        $region41: #{face_image_forward.1} parent=39 // pred_check
          %p271 = pneg %p166
        $region42: #{face_image_forward.1} parent=39 // pred_check_branch
          %273 = sbr.rel (%p271) target = $region44
        $region43: #{face_image_forward.1} parent=39 // pred_region
          %s274 = sand.u32 %s20, 1
          %s275 = scalar_lea.sflag [#allocation3], %s274
          %s276 = sand.u32 %s156, 1
          %s277 = smul.addr %s276, 48
          %s278 = scalar_lea.vmem [#allocation11], %s277
          %s280 = ssub.s32 768, 768
          %281 = vsyncadd %s275, %s280
          %s282 = smul.addr %s20, 6
          %s283 = smul.addr %s282, 128
          %s284 = scalar_lea.hbm %s6, %s283
          %s285 = sshll.u32 %s278, 4
          %s286 = int_to_ptr.vmem [resolvable:$true] %s285
          %291 = dma.hbm_to_vmem [thread:$0]  %s284, 768, %s286, %s275, 128, 128, 8
        $region44: #{face_image_forward.1} parent=39 // pred_fallthru
          _
      $region40: #{face_image_forward.1} parent=5 // pred_fallthru
        _
      %p292 = scmp.le.s32.totalorder 1, %s20
      %p293 = scmp.lt.s32.totalorder %s20, 3
      %p294 = pnand %p292, %p293
      %p295 = pneg %p294
      // Predicated region
      $region45: #{face_image_forward.1} parent=5 // pred_check
        _
      $region46: #{face_image_forward.1} parent=5 // pred_check_branch
        %297 = sbr.rel (%p294) target = $region48
      $region47: #{face_image_forward.1} parent=5 // pred_region
        %s298 = ssub.s32 %s20, 1
        // Predicated region
        $region49: #{face_image_forward.1} parent=47 // pred_check
          %p299 = pneg %p41
        $region50: #{face_image_forward.1} parent=47 // pred_check_branch
          %301 = sbr.rel (%p299) target = $region52
        $region51: #{face_image_forward.1} parent=47 // pred_region
          %302 = dma.done [#allocation5], 16
        $region52: #{face_image_forward.1} parent=47 // pred_fallthru
          _
        // Predicated region
        $region53: #{face_image_forward.1} parent=47 // pred_check
          %p303 = pneg %p62
        $region54: #{face_image_forward.1} parent=47 // pred_check_branch
          %305 = sbr.rel (%p303) target = $region56
        $region55: #{face_image_forward.1} parent=47 // pred_region
          %306 = dma.done [#allocation7], 16
        $region56: #{face_image_forward.1} parent=47 // pred_fallthru
          _
        // Predicated region
        $region57: #{face_image_forward.1} parent=47 // pred_check
          %p307 = pneg %p83
        $region58: #{face_image_forward.1} parent=47 // pred_check_branch
          %309 = sbr.rel (%p307) target = $region60
        $region59: #{face_image_forward.1} parent=47 // pred_region
          %310 = dma.done [#allocation3], 256
        $region60: #{face_image_forward.1} parent=47 // pred_fallthru
          _
        // Predicated region
        $region61: #{face_image_forward.1} parent=47 // pred_check
          %p311 = pneg %p104
        $region62: #{face_image_forward.1} parent=47 // pred_check_branch
          %313 = sbr.rel (%p311) target = $region64
        $region63: #{face_image_forward.1} parent=47 // pred_region
          %314 = dma.done [#allocation10], 256
        $region64: #{face_image_forward.1} parent=47 // pred_fallthru
          _
        %s315 = sand.u32 %s25, 1
        %s316 = scalar_lea.sflag [#allocation3], %s315
        %s317 = sand.u32 %s159, 1
        %s318 = smul.addr %s317, 48
        %s319 = scalar_lea.vmem [#allocation11], %s318
        // Predicated region
        $region65: #{face_image_forward.1} parent=47 // pred_check
          %p320 = pneg %p172
        $region66: #{face_image_forward.1} parent=47 // pred_check_branch
          %322 = sbr.rel (%p320) target = $region68
        $region67: #{face_image_forward.1} parent=47 // pred_region
          %323 = dma.done %s316, 768
        $region68: #{face_image_forward.1} parent=47 // pred_fallthru
          _
        %324 = sfence
        %p325 = pneg %p41
        %p326 = pneg %p38
        %p327 = pneg %p62
        %p328 = pneg %p59
        %p329 = pneg %p83
        %p330 = pneg %p80
        %p331 = pneg %p104
        %p332 = pneg %p101
        %p333 = pneg %p125
        %p334 = pneg %p122
        %p335 = pneg %p146
        %p336 = pneg %p143
        %s337 = sand.u32 %s25, 1
        %s338 = scalar_lea.sflag [#allocation3], %s337
        %s339 = sand.u32 %s159, 1
        %s340 = smul.addr %s339, 48
        %s341 = scalar_lea.vmem [#allocation11], %s340
        %p342 = pneg %p172
        %p343 = pneg %p169
        %p344 = pneg %p198
        %p345 = pneg %p195
        %s346 = sand.u32 %s185, 1
        %s347 = scalar_lea.sflag [#allocation4], %s346
        %s348 = sand.u32 %s185, 1
        %s349 = smul.addr %s348, 16
        %s350 = scalar_lea.vmem [#allocation12], %s349
        %v351 = vld [vmem:[#allocation8] sm:$0xff]
        %v352 = vld [vmem:[#allocation8 + $0x8] sm:$0xff]
        %v353 = vld [vmem:[#allocation9] sm:$0xff]
        %v354 = vld [vmem:[#allocation9 + $0x8] sm:$0xff]
        %v355 = vld [vmem:[%s319] sm:$0xff]
        %v356 = vld [vmem:[%s319 + $0x8] sm:$0xff]
        %v357 = vld [vmem:[%s319 + $0x10] sm:$0xff]
        %v358 = vld [vmem:[%s319 + $0x18] sm:$0xff]
        %v359 = vld [vmem:[%s319 + $0x20] sm:$0xff]
        %v360 = vld [vmem:[%s319 + $0x28] sm:$0xff]
        %vm361 = vcmask 130048
        %v363 = vsel %vm361, %v355, 0
        %v366 = vsel %vm361, %v356, 0
        %368 = vmatprep.subr.mxu0 0.0
        %369 = vmatpush1.msra.mxu0 %v353
        %370 = vmatprep.subr.mxu0 0.0
        %371 = vmatpush1.msra.mxu0 %v354
        %372 = vmatprep.subr.mxu0 0.0
        %373 = vmatpush1.msra.mxu0 0.0
        %374 = vmatprep.subr.mxu0 0.0
        %375 = vmatpush1.msra.mxu0 0.0
        %376 = vmatprep.subr.mxu0 0.0
        %377 = vmatpush1.msra.mxu0 0.0
        %378 = vmatprep.subr.mxu0 0.0
        %379 = vmatpush1.msra.mxu0 0.0
        %380 = vmatprep.subr.mxu0 0.0
        %381 = vmatpush1.msra.mxu0 0.0
        %382 = vmatprep.subr.mxu0 0.0
        %383 = vmatpush1.msra.mxu0 0.0
        %384 = vmatprep.subr.mxu0 0.0
        %385 = vmatpush1.msra.mxu0 0.0
        %386 = vmatprep.subr.mxu0 0.0
        %387 = vmatpush1.msra.mxu0 0.0
        %388 = vmatprep.subr.mxu0 0.0
        %389 = vmatpush1.msra.mxu0 0.0
        %390 = vmatprep.subr.mxu0 0.0
        %391 = vmatpush1.msra.mxu0 0.0
        %392 = vmatprep.subr.mxu0 0.0
        %393 = vmatpush1.msra.mxu0 0.0
        %394 = vmatprep.subr.mxu0 0.0
        %395 = vmatpush1.msra.mxu0 0.0
        %396 = vmatprep.subr.mxu0 0.0
        %397 = vmatpush1.msra.mxu0 0.0
        %398 = vmatprep.subr.mxu0 0.0
        %399 = vmatpush1.msra.mxu0 0.0
        %400 = vmatprep.subr.mxu0 0.0
        %401 = vmatpush1.msra.mxu0 0.0
        %402 = vmatprep.subr.mxu0 0.0
        %403 = vmatpush1.msra.mxu0 0.0
        %404 = vmatprep.subr.mxu0 0.0
        %405 = vmatpush1.msra.mxu0 0.0
        %406 = vmatprep.subr.mxu0 0.0
        %407 = vmatpush1.msra.mxu0 0.0
        %408 = vmatprep.subr.mxu0 0.0
        %409 = vmatpush1.msra.mxu0 0.0
        %410 = vmatprep.subr.mxu0 0.0
        %411 = vmatpush1.msra.mxu0 0.0
        %412 = vmatprep.subr.mxu0 0.0
        %413 = vmatpush1.msra.mxu0 0.0
        %414 = vmatprep.subr.mxu0 0.0
        %415 = vmatpush1.msra.mxu0 0.0
        %416 = vmatprep.subr.mxu0 0.0
        %417 = vmatpush1.msra.mxu0 0.0
        %418 = vmatprep.subr.mxu0 0.0
        %419 = vmatpush1.msra.mxu0 0.0
        %420 = vmatprep.subr.mxu0 0.0
        %421 = vmatpush1.msra.mxu0 0.0
        %422 = vmatprep.subr.mxu0 0.0
        %423 = vmatpush1.msra.mxu0 0.0
        %424 = vmatprep.subr.mxu0 0.0
        %425 = vmatpush1.msra.mxu0 0.0
        %426 = vmatprep.subr.mxu0 0.0
        %427 = vmatpush1.msra.mxu0 0.0
        %428 = vmatprep.subr.mxu0 0.0
        %429 = vmatpush1.msra.mxu0 0.0
        %430 = vmatprep.subr.mxu0 0.0
        %431 = vmatpush1.msra.mxu0 0.0
        %432 = vmatprep.mubr.f32.mxu0 0.0
        %433 = vmatmul.mubr.f32.gmra.mrb[0].mxu0 %v363
        %v434 = vpop.f32.mrb[0].mxu0
        %v435 = vadd.f32 0.0, %v434
        %v436 = vpop.f32.mrb[0].mxu0
        %437 = vmatprep.mubr.f32.mxu0 0.0
        %438 = vmatmul.mubr.f32.gmra.mrb[0].mxu0 %v366
        %v439 = vpop.f32.mrb[0].mxu0
        %v440 = vadd.f32 0.0, %v439
        %v441 = vpop.f32.mrb[0].mxu0
        %442 = vdwg.mxu0
        %v444 = vsel %vm361, %v351, 0
        %v447 = vsel %vm361, %v352, 0
        %449 = vmatprep.subr.mxu0 0.0
        %450 = vmatpush1.msra.mxu0 %v435
        %451 = vmatprep.subr.mxu0 0.0
        %452 = vmatpush1.msra.mxu0 %v440
        %453 = vmatprep.subr.mxu0 0.0
        %454 = vmatpush1.msra.mxu0 0.0
        %455 = vmatprep.subr.mxu0 0.0
        %456 = vmatpush1.msra.mxu0 0.0
        %457 = vmatprep.subr.mxu0 0.0
        %458 = vmatpush1.msra.mxu0 0.0
        %459 = vmatprep.subr.mxu0 0.0
        %460 = vmatpush1.msra.mxu0 0.0
        %461 = vmatprep.subr.mxu0 0.0
        %462 = vmatpush1.msra.mxu0 0.0
        %463 = vmatprep.subr.mxu0 0.0
        %464 = vmatpush1.msra.mxu0 0.0
        %465 = vmatprep.subr.mxu0 0.0
        %466 = vmatpush1.msra.mxu0 0.0
        %467 = vmatprep.subr.mxu0 0.0
        %468 = vmatpush1.msra.mxu0 0.0
        %469 = vmatprep.subr.mxu0 0.0
        %470 = vmatpush1.msra.mxu0 0.0
        %471 = vmatprep.subr.mxu0 0.0
        %472 = vmatpush1.msra.mxu0 0.0
        %473 = vmatprep.subr.mxu0 0.0
        %474 = vmatpush1.msra.mxu0 0.0
        %475 = vmatprep.subr.mxu0 0.0
        %476 = vmatpush1.msra.mxu0 0.0
        %477 = vmatprep.subr.mxu0 0.0
        %478 = vmatpush1.msra.mxu0 0.0
        %479 = vmatprep.subr.mxu0 0.0
        %480 = vmatpush1.msra.mxu0 0.0
        %481 = vmatprep.subr.mxu0 0.0
        %482 = vmatpush1.msra.mxu0 0.0
        %483 = vmatprep.subr.mxu0 0.0
        %484 = vmatpush1.msra.mxu0 0.0
        %485 = vmatprep.subr.mxu0 0.0
        %486 = vmatpush1.msra.mxu0 0.0
        %487 = vmatprep.subr.mxu0 0.0
        %488 = vmatpush1.msra.mxu0 0.0
        %489 = vmatprep.subr.mxu0 0.0
        %490 = vmatpush1.msra.mxu0 0.0
        %491 = vmatprep.subr.mxu0 0.0
        %492 = vmatpush1.msra.mxu0 0.0
        %493 = vmatprep.subr.mxu0 0.0
        %494 = vmatpush1.msra.mxu0 0.0
        %495 = vmatprep.subr.mxu0 0.0
        %496 = vmatpush1.msra.mxu0 0.0
        %497 = vmatprep.subr.mxu0 0.0
        %498 = vmatpush1.msra.mxu0 0.0
        %499 = vmatprep.subr.mxu0 0.0
        %500 = vmatpush1.msra.mxu0 0.0
        %501 = vmatprep.subr.mxu0 0.0
        %502 = vmatpush1.msra.mxu0 0.0
        %503 = vmatprep.subr.mxu0 0.0
        %504 = vmatpush1.msra.mxu0 0.0
        %505 = vmatprep.subr.mxu0 0.0
        %506 = vmatpush1.msra.mxu0 0.0
        %507 = vmatprep.subr.mxu0 0.0
        %508 = vmatpush1.msra.mxu0 0.0
        %509 = vmatprep.subr.mxu0 0.0
        %510 = vmatpush1.msra.mxu0 0.0
        %511 = vmatprep.subr.mxu0 0.0
        %512 = vmatpush1.msra.mxu0 0.0
        %513 = vmatprep.mubr.f32.mxu0 0.0
        %514 = vmatmul.mubr.f32.gmra.mrb[0].mxu0 %v444
        %v515 = vpop.f32.mrb[0].mxu0
        %v516 = vadd.f32 0.0, %v515
        %v517 = vpop.f32.mrb[0].mxu0
        %518 = vmatprep.mubr.f32.mxu0 0.0
        %519 = vmatmul.mubr.f32.gmra.mrb[0].mxu0 %v447
        %v520 = vpop.f32.mrb[0].mxu0
        %v521 = vadd.f32 0.0, %v520
        %v522 = vpop.f32.mrb[0].mxu0
        %523 = vdwg.mxu0
        %v525 = vsel %vm361, %v357, 0
        %v528 = vsel %vm361, %v358, 0
        %530 = vmatprep.subr.mxu0 0.0
        %531 = vmatpush1.msra.mxu0 %v353
        %532 = vmatprep.subr.mxu0 0.0
        %533 = vmatpush1.msra.mxu0 %v354
        %534 = vmatprep.subr.mxu0 0.0
        %535 = vmatpush1.msra.mxu0 0.0
        %536 = vmatprep.subr.mxu0 0.0
        %537 = vmatpush1.msra.mxu0 0.0
        %538 = vmatprep.subr.mxu0 0.0
        %539 = vmatpush1.msra.mxu0 0.0
        %540 = vmatprep.subr.mxu0 0.0
        %541 = vmatpush1.msra.mxu0 0.0
        %542 = vmatprep.subr.mxu0 0.0
        %543 = vmatpush1.msra.mxu0 0.0
        %544 = vmatprep.subr.mxu0 0.0
        %545 = vmatpush1.msra.mxu0 0.0
        %546 = vmatprep.subr.mxu0 0.0
        %547 = vmatpush1.msra.mxu0 0.0
        %548 = vmatprep.subr.mxu0 0.0
        %549 = vmatpush1.msra.mxu0 0.0
        %550 = vmatprep.subr.mxu0 0.0
        %551 = vmatpush1.msra.mxu0 0.0
        %552 = vmatprep.subr.mxu0 0.0
        %553 = vmatpush1.msra.mxu0 0.0
        %554 = vmatprep.subr.mxu0 0.0
        %555 = vmatpush1.msra.mxu0 0.0
        %556 = vmatprep.subr.mxu0 0.0
        %557 = vmatpush1.msra.mxu0 0.0
        %558 = vmatprep.subr.mxu0 0.0
        %559 = vmatpush1.msra.mxu0 0.0
        %560 = vmatprep.subr.mxu0 0.0
        %561 = vmatpush1.msra.mxu0 0.0
        %562 = vmatprep.subr.mxu0 0.0
        %563 = vmatpush1.msra.mxu0 0.0
        %564 = vmatprep.subr.mxu0 0.0
        %565 = vmatpush1.msra.mxu0 0.0
        %566 = vmatprep.subr.mxu0 0.0
        %567 = vmatpush1.msra.mxu0 0.0
        %568 = vmatprep.subr.mxu0 0.0
        %569 = vmatpush1.msra.mxu0 0.0
        %570 = vmatprep.subr.mxu0 0.0
        %571 = vmatpush1.msra.mxu0 0.0
        %572 = vmatprep.subr.mxu0 0.0
        %573 = vmatpush1.msra.mxu0 0.0
        %574 = vmatprep.subr.mxu0 0.0
        %575 = vmatpush1.msra.mxu0 0.0
        %576 = vmatprep.subr.mxu0 0.0
        %577 = vmatpush1.msra.mxu0 0.0
        %578 = vmatprep.subr.mxu0 0.0
        %579 = vmatpush1.msra.mxu0 0.0
        %580 = vmatprep.subr.mxu0 0.0
        %581 = vmatpush1.msra.mxu0 0.0
        %582 = vmatprep.subr.mxu0 0.0
        %583 = vmatpush1.msra.mxu0 0.0
        %584 = vmatprep.subr.mxu0 0.0
        %585 = vmatpush1.msra.mxu0 0.0
        %586 = vmatprep.subr.mxu0 0.0
        %587 = vmatpush1.msra.mxu0 0.0
        %588 = vmatprep.subr.mxu0 0.0
        %589 = vmatpush1.msra.mxu0 0.0
        %590 = vmatprep.subr.mxu0 0.0
        %591 = vmatpush1.msra.mxu0 0.0
        %592 = vmatprep.subr.mxu0 0.0
        %593 = vmatpush1.msra.mxu0 0.0
        %594 = vmatprep.mubr.f32.mxu0 0.0
        %595 = vmatmul.mubr.f32.gmra.mrb[0].mxu0 %v525
        %v596 = vpop.f32.mrb[0].mxu0
        %v597 = vadd.f32 0.0, %v596
        %v598 = vpop.f32.mrb[0].mxu0
        %599 = vmatprep.mubr.f32.mxu0 0.0
        %600 = vmatmul.mubr.f32.gmra.mrb[0].mxu0 %v528
        %v601 = vpop.f32.mrb[0].mxu0
        %v602 = vadd.f32 0.0, %v601
        %v603 = vpop.f32.mrb[0].mxu0
        %604 = vdwg.mxu0
        %605 = vmatprep.subr.mxu0 0.0
        %606 = vmatpush1.msra.mxu0 %v597
        %607 = vmatprep.subr.mxu0 0.0
        %608 = vmatpush1.msra.mxu0 %v602
        %609 = vmatprep.subr.mxu0 0.0
        %610 = vmatpush1.msra.mxu0 0.0
        %611 = vmatprep.subr.mxu0 0.0
        %612 = vmatpush1.msra.mxu0 0.0
        %613 = vmatprep.subr.mxu0 0.0
        %614 = vmatpush1.msra.mxu0 0.0
        %615 = vmatprep.subr.mxu0 0.0
        %616 = vmatpush1.msra.mxu0 0.0
        %617 = vmatprep.subr.mxu0 0.0
        %618 = vmatpush1.msra.mxu0 0.0
        %619 = vmatprep.subr.mxu0 0.0
        %620 = vmatpush1.msra.mxu0 0.0
        %621 = vmatprep.subr.mxu0 0.0
        %622 = vmatpush1.msra.mxu0 0.0
        %623 = vmatprep.subr.mxu0 0.0
        %624 = vmatpush1.msra.mxu0 0.0
        %625 = vmatprep.subr.mxu0 0.0
        %626 = vmatpush1.msra.mxu0 0.0
        %627 = vmatprep.subr.mxu0 0.0
        %628 = vmatpush1.msra.mxu0 0.0
        %629 = vmatprep.subr.mxu0 0.0
        %630 = vmatpush1.msra.mxu0 0.0
        %631 = vmatprep.subr.mxu0 0.0
        %632 = vmatpush1.msra.mxu0 0.0
        %633 = vmatprep.subr.mxu0 0.0
        %634 = vmatpush1.msra.mxu0 0.0
        %635 = vmatprep.subr.mxu0 0.0
        %636 = vmatpush1.msra.mxu0 0.0
        %637 = vmatprep.subr.mxu0 0.0
        %638 = vmatpush1.msra.mxu0 0.0
        %639 = vmatprep.subr.mxu0 0.0
        %640 = vmatpush1.msra.mxu0 0.0
        %641 = vmatprep.subr.mxu0 0.0
        %642 = vmatpush1.msra.mxu0 0.0
        %643 = vmatprep.subr.mxu0 0.0
        %644 = vmatpush1.msra.mxu0 0.0
        %645 = vmatprep.subr.mxu0 0.0
        %646 = vmatpush1.msra.mxu0 0.0
        %647 = vmatprep.subr.mxu0 0.0
        %648 = vmatpush1.msra.mxu0 0.0
        %649 = vmatprep.subr.mxu0 0.0
        %650 = vmatpush1.msra.mxu0 0.0
        %651 = vmatprep.subr.mxu0 0.0
        %652 = vmatpush1.msra.mxu0 0.0
        %653 = vmatprep.subr.mxu0 0.0
        %654 = vmatpush1.msra.mxu0 0.0
        %655 = vmatprep.subr.mxu0 0.0
        %656 = vmatpush1.msra.mxu0 0.0
        %657 = vmatprep.subr.mxu0 0.0
        %658 = vmatpush1.msra.mxu0 0.0
        %659 = vmatprep.subr.mxu0 0.0
        %660 = vmatpush1.msra.mxu0 0.0
        %661 = vmatprep.subr.mxu0 0.0
        %662 = vmatpush1.msra.mxu0 0.0
        %663 = vmatprep.subr.mxu0 0.0
        %664 = vmatpush1.msra.mxu0 0.0
        %665 = vmatprep.subr.mxu0 0.0
        %666 = vmatpush1.msra.mxu0 0.0
        %667 = vmatprep.subr.mxu0 0.0
        %668 = vmatpush1.msra.mxu0 0.0
        %669 = vmatprep.mubr.f32.mxu0 0.0
        %670 = vmatmul.mubr.f32.gmra.mrb[0].mxu0 %v444
        %v671 = vpop.f32.mrb[0].mxu0
        %v672 = vadd.f32 0.0, %v671
        %v673 = vpop.f32.mrb[0].mxu0
        %674 = vmatprep.mubr.f32.mxu0 0.0
        %675 = vmatmul.mubr.f32.gmra.mrb[0].mxu0 %v447
        %v676 = vpop.f32.mrb[0].mxu0
        %v677 = vadd.f32 0.0, %v676
        %v678 = vpop.f32.mrb[0].mxu0
        %679 = vdwg.mxu0
        %v681 = vsel %vm361, %v359, 0
        %v684 = vsel %vm361, %v360, 0
        %686 = vmatprep.subr.mxu0 0.0
        %687 = vmatpush1.msra.mxu0 %v353
        %688 = vmatprep.subr.mxu0 0.0
        %689 = vmatpush1.msra.mxu0 %v354
        %690 = vmatprep.subr.mxu0 0.0
        %691 = vmatpush1.msra.mxu0 0.0
        %692 = vmatprep.subr.mxu0 0.0
        %693 = vmatpush1.msra.mxu0 0.0
        %694 = vmatprep.subr.mxu0 0.0
        %695 = vmatpush1.msra.mxu0 0.0
        %696 = vmatprep.subr.mxu0 0.0
        %697 = vmatpush1.msra.mxu0 0.0
        %698 = vmatprep.subr.mxu0 0.0
        %699 = vmatpush1.msra.mxu0 0.0
        %700 = vmatprep.subr.mxu0 0.0
        %701 = vmatpush1.msra.mxu0 0.0
        %702 = vmatprep.subr.mxu0 0.0
        %703 = vmatpush1.msra.mxu0 0.0
        %704 = vmatprep.subr.mxu0 0.0
        %705 = vmatpush1.msra.mxu0 0.0
        %706 = vmatprep.subr.mxu0 0.0
        %707 = vmatpush1.msra.mxu0 0.0
        %708 = vmatprep.subr.mxu0 0.0
        %709 = vmatpush1.msra.mxu0 0.0
        %710 = vmatprep.subr.mxu0 0.0
        %711 = vmatpush1.msra.mxu0 0.0
        %712 = vmatprep.subr.mxu0 0.0
        %713 = vmatpush1.msra.mxu0 0.0
        %714 = vmatprep.subr.mxu0 0.0
        %715 = vmatpush1.msra.mxu0 0.0
        %716 = vmatprep.subr.mxu0 0.0
        %717 = vmatpush1.msra.mxu0 0.0
        %718 = vmatprep.subr.mxu0 0.0
        %719 = vmatpush1.msra.mxu0 0.0
        %720 = vmatprep.subr.mxu0 0.0
        %721 = vmatpush1.msra.mxu0 0.0
        %722 = vmatprep.subr.mxu0 0.0
        %723 = vmatpush1.msra.mxu0 0.0
        %724 = vmatprep.subr.mxu0 0.0
        %725 = vmatpush1.msra.mxu0 0.0
        %726 = vmatprep.subr.mxu0 0.0
        %727 = vmatpush1.msra.mxu0 0.0
        %728 = vmatprep.subr.mxu0 0.0
        %729 = vmatpush1.msra.mxu0 0.0
        %730 = vmatprep.subr.mxu0 0.0
        %731 = vmatpush1.msra.mxu0 0.0
        %732 = vmatprep.subr.mxu0 0.0
        %733 = vmatpush1.msra.mxu0 0.0
        %734 = vmatprep.subr.mxu0 0.0
        %735 = vmatpush1.msra.mxu0 0.0
        %736 = vmatprep.subr.mxu0 0.0
        %737 = vmatpush1.msra.mxu0 0.0
        %738 = vmatprep.subr.mxu0 0.0
        %739 = vmatpush1.msra.mxu0 0.0
        %740 = vmatprep.subr.mxu0 0.0
        %741 = vmatpush1.msra.mxu0 0.0
        %742 = vmatprep.subr.mxu0 0.0
        %743 = vmatpush1.msra.mxu0 0.0
        %744 = vmatprep.subr.mxu0 0.0
        %745 = vmatpush1.msra.mxu0 0.0
        %746 = vmatprep.subr.mxu0 0.0
        %747 = vmatpush1.msra.mxu0 0.0
        %748 = vmatprep.subr.mxu0 0.0
        %749 = vmatpush1.msra.mxu0 0.0
        %750 = vmatprep.mubr.f32.mxu0 0.0
        %751 = vmatmul.mubr.f32.gmra.mrb[0].mxu0 %v681
        %v752 = vpop.f32.mrb[0].mxu0
        %v753 = vadd.f32 0.0, %v752
        %v754 = vpop.f32.mrb[0].mxu0
        %755 = vmatprep.mubr.f32.mxu0 0.0
        %756 = vmatmul.mubr.f32.gmra.mrb[0].mxu0 %v684
        %v757 = vpop.f32.mrb[0].mxu0
        %v758 = vadd.f32 0.0, %v757
        %v759 = vpop.f32.mrb[0].mxu0
        %760 = vdwg.mxu0
        %761 = vmatprep.subr.mxu0 0.0
        %762 = vmatpush1.msra.mxu0 %v753
        %763 = vmatprep.subr.mxu0 0.0
        %764 = vmatpush1.msra.mxu0 %v758
        %765 = vmatprep.subr.mxu0 0.0
        %766 = vmatpush1.msra.mxu0 0.0
        %767 = vmatprep.subr.mxu0 0.0
        %768 = vmatpush1.msra.mxu0 0.0
        %769 = vmatprep.subr.mxu0 0.0
        %770 = vmatpush1.msra.mxu0 0.0
        %771 = vmatprep.subr.mxu0 0.0
        %772 = vmatpush1.msra.mxu0 0.0
        %773 = vmatprep.subr.mxu0 0.0
        %774 = vmatpush1.msra.mxu0 0.0
        %775 = vmatprep.subr.mxu0 0.0
        %776 = vmatpush1.msra.mxu0 0.0
        %777 = vmatprep.subr.mxu0 0.0
        %778 = vmatpush1.msra.mxu0 0.0
        %779 = vmatprep.subr.mxu0 0.0
        %780 = vmatpush1.msra.mxu0 0.0
        %781 = vmatprep.subr.mxu0 0.0
        %782 = vmatpush1.msra.mxu0 0.0
        %783 = vmatprep.subr.mxu0 0.0
        %784 = vmatpush1.msra.mxu0 0.0
        %785 = vmatprep.subr.mxu0 0.0
        %786 = vmatpush1.msra.mxu0 0.0
        %787 = vmatprep.subr.mxu0 0.0
        %788 = vmatpush1.msra.mxu0 0.0
        %789 = vmatprep.subr.mxu0 0.0
        %790 = vmatpush1.msra.mxu0 0.0
        %791 = vmatprep.subr.mxu0 0.0
        %792 = vmatpush1.msra.mxu0 0.0
        %793 = vmatprep.subr.mxu0 0.0
        %794 = vmatpush1.msra.mxu0 0.0
        %795 = vmatprep.subr.mxu0 0.0
        %796 = vmatpush1.msra.mxu0 0.0
        %797 = vmatprep.subr.mxu0 0.0
        %798 = vmatpush1.msra.mxu0 0.0
        %799 = vmatprep.subr.mxu0 0.0
        %800 = vmatpush1.msra.mxu0 0.0
        %801 = vmatprep.subr.mxu0 0.0
        %802 = vmatpush1.msra.mxu0 0.0
        %803 = vmatprep.subr.mxu0 0.0
        %804 = vmatpush1.msra.mxu0 0.0
        %805 = vmatprep.subr.mxu0 0.0
        %806 = vmatpush1.msra.mxu0 0.0
        %807 = vmatprep.subr.mxu0 0.0
        %808 = vmatpush1.msra.mxu0 0.0
        %809 = vmatprep.subr.mxu0 0.0
        %810 = vmatpush1.msra.mxu0 0.0
        %811 = vmatprep.subr.mxu0 0.0
        %812 = vmatpush1.msra.mxu0 0.0
        %813 = vmatprep.subr.mxu0 0.0
        %814 = vmatpush1.msra.mxu0 0.0
        %815 = vmatprep.subr.mxu0 0.0
        %816 = vmatpush1.msra.mxu0 0.0
        %817 = vmatprep.subr.mxu0 0.0
        %818 = vmatpush1.msra.mxu0 0.0
        %819 = vmatprep.subr.mxu0 0.0
        %820 = vmatpush1.msra.mxu0 0.0
        %821 = vmatprep.subr.mxu0 0.0
        %822 = vmatpush1.msra.mxu0 0.0
        %823 = vmatprep.subr.mxu0 0.0
        %824 = vmatpush1.msra.mxu0 0.0
        %825 = vmatprep.mubr.f32.mxu0 0.0
        %826 = vmatmul.mubr.f32.gmra.mrb[0].mxu0 %v444
        %v827 = vpop.f32.mrb[0].mxu0
        %v828 = vadd.f32 0.0, %v827
        %v829 = vpop.f32.mrb[0].mxu0
        %830 = vmatprep.mubr.f32.mxu0 0.0
        %831 = vmatmul.mubr.f32.gmra.mrb[0].mxu0 %v447
        %v832 = vpop.f32.mrb[0].mxu0
        %v833 = vadd.f32 0.0, %v832
        %v834 = vpop.f32.mrb[0].mxu0
        %835 = vdwg.mxu0
        %s836 = sld [smem:[#allocation2]]
        %v837 = vstv %s836
        %v838 = vmul.f32 %v516, %v837
        %v839 = vmul.f32 %v521, %v837
        %s840 = sld [smem:[#allocation2 + $0xb]]
        %v841 = vstv %s840
        %v842 = vmul.f32 %v672, %v841
        %v843 = vmul.f32 %v677, %v841
        %v844 = vadd.f32 %v838, %v842
        %v845 = vadd.f32 %v839, %v843
        %s846 = sld [smem:[#allocation2 + $0x16]]
        %v847 = vstv %s846
        %v848 = vmul.f32 %v828, %v847
        %v849 = vmul.f32 %v833, %v847
        %v850 = vadd.f32 %v844, %v848
        %v851 = vadd.f32 %v845, %v849
        %s852 = sld [smem:[#allocation6]]
        %v853 = vstv %s852
        %v854 = vadd.f32 %v850, %v853
        %v855 = vadd.f32 %v851, %v853
        %s856 = sld [smem:[#allocation2 + $0x1]]
        %v857 = vstv %s856
        %v858 = vmul.f32 %v516, %v857
        %v859 = vmul.f32 %v521, %v857
        %s860 = sld [smem:[#allocation2 + $0xc]]
        %v861 = vstv %s860
        %v862 = vmul.f32 %v672, %v861
        %v863 = vmul.f32 %v677, %v861
        %v864 = vadd.f32 %v858, %v862
        %v865 = vadd.f32 %v859, %v863
        %s866 = sld [smem:[#allocation2 + $0x17]]
        %v867 = vstv %s866
        %v868 = vmul.f32 %v828, %v867
        %v869 = vmul.f32 %v833, %v867
        %v870 = vadd.f32 %v864, %v868
        %v871 = vadd.f32 %v865, %v869
        %s872 = sld [smem:[#allocation6 + $0x1]]
        %v873 = vstv %s872
        %v874 = vadd.f32 %v870, %v873
        %v875 = vadd.f32 %v871, %v873
        %s876 = sld [smem:[#allocation2 + $0x2]]
        %v877 = vstv %s876
        %v878 = vmul.f32 %v516, %v877
        %v879 = vmul.f32 %v521, %v877
        %s880 = sld [smem:[#allocation2 + $0xd]]
        %v881 = vstv %s880
        %v882 = vmul.f32 %v672, %v881
        %v883 = vmul.f32 %v677, %v881
        %v884 = vadd.f32 %v878, %v882
        %v885 = vadd.f32 %v879, %v883
        %s886 = sld [smem:[#allocation2 + $0x18]]
        %v887 = vstv %s886
        %v888 = vmul.f32 %v828, %v887
        %v889 = vmul.f32 %v833, %v887
        %v890 = vadd.f32 %v884, %v888
        %v891 = vadd.f32 %v885, %v889
        %s892 = sld [smem:[#allocation6 + $0x2]]
        %v893 = vstv %s892
        %v894 = vadd.f32 %v890, %v893
        %v895 = vadd.f32 %v891, %v893
        %v896 = vmax.f32 %v874, %v894
        %v897 = vmax.f32 %v875, %v895
        %s898 = sld [smem:[#allocation2 + $0x3]]
        %v899 = vstv %s898
        %v900 = vmul.f32 %v516, %v899
        %v901 = vmul.f32 %v521, %v899
        %s902 = sld [smem:[#allocation2 + $0xe]]
        %v903 = vstv %s902
        %v904 = vmul.f32 %v672, %v903
        %v905 = vmul.f32 %v677, %v903
        %v906 = vadd.f32 %v900, %v904
        %v907 = vadd.f32 %v901, %v905
        %s908 = sld [smem:[#allocation2 + $0x19]]
        %v909 = vstv %s908
        %v910 = vmul.f32 %v828, %v909
        %v911 = vmul.f32 %v833, %v909
        %v912 = vadd.f32 %v906, %v910
        %v913 = vadd.f32 %v907, %v911
        %s914 = sld [smem:[#allocation6 + $0x3]]
        %v915 = vstv %s914
        %v916 = vadd.f32 %v912, %v915
        %v917 = vadd.f32 %v913, %v915
        %v918 = vmax.f32 %v896, %v916
        %v919 = vmax.f32 %v897, %v917
        %s920 = sld [smem:[#allocation2 + $0x4]]
        %v921 = vstv %s920
        %v922 = vmul.f32 %v516, %v921
        %v923 = vmul.f32 %v521, %v921
        %s924 = sld [smem:[#allocation2 + $0xf]]
        %v925 = vstv %s924
        %v926 = vmul.f32 %v672, %v925
        %v927 = vmul.f32 %v677, %v925
        %v928 = vadd.f32 %v922, %v926
        %v929 = vadd.f32 %v923, %v927
        %s930 = sld [smem:[#allocation2 + $0x1a]]
        %v931 = vstv %s930
        %v932 = vmul.f32 %v828, %v931
        %v933 = vmul.f32 %v833, %v931
        %v934 = vadd.f32 %v928, %v932
        %v935 = vadd.f32 %v929, %v933
        %s936 = sld [smem:[#allocation6 + $0x4]]
        %v937 = vstv %s936
        %v938 = vadd.f32 %v934, %v937
        %v939 = vadd.f32 %v935, %v937
        %v940 = vmax.f32 %v918, %v938
        %v941 = vmax.f32 %v919, %v939
        %s942 = sld [smem:[#allocation2 + $0x5]]
        %v943 = vstv %s942
        %v944 = vmul.f32 %v516, %v943
        %v945 = vmul.f32 %v521, %v943
        %s946 = sld [smem:[#allocation2 + $0x10]]
        %v947 = vstv %s946
        %v948 = vmul.f32 %v672, %v947
        %v949 = vmul.f32 %v677, %v947
        %v950 = vadd.f32 %v944, %v948
        %v951 = vadd.f32 %v945, %v949
        %s952 = sld [smem:[#allocation2 + $0x1b]]
        %v953 = vstv %s952
        %v954 = vmul.f32 %v828, %v953
        %v955 = vmul.f32 %v833, %v953
        %v956 = vadd.f32 %v950, %v954
        %v957 = vadd.f32 %v951, %v955
        %s958 = sld [smem:[#allocation6 + $0x5]]
        %v959 = vstv %s958
        %v960 = vadd.f32 %v956, %v959
        %v961 = vadd.f32 %v957, %v959
        %v962 = vmax.f32 %v940, %v960
        %v963 = vmax.f32 %v941, %v961
        %s964 = sld [smem:[#allocation2 + $0x6]]
        %v965 = vstv %s964
        %v966 = vmul.f32 %v516, %v965
        %v967 = vmul.f32 %v521, %v965
        %s968 = sld [smem:[#allocation2 + $0x11]]
        %v969 = vstv %s968
        %v970 = vmul.f32 %v672, %v969
        %v971 = vmul.f32 %v677, %v969
        %v972 = vadd.f32 %v966, %v970
        %v973 = vadd.f32 %v967, %v971
        %s974 = sld [smem:[#allocation2 + $0x1c]]
        %v975 = vstv %s974
        %v976 = vmul.f32 %v828, %v975
        %v977 = vmul.f32 %v833, %v975
        %v978 = vadd.f32 %v972, %v976
        %v979 = vadd.f32 %v973, %v977
        %s980 = sld [smem:[#allocation6 + $0x6]]
        %v981 = vstv %s980
        %v982 = vadd.f32 %v978, %v981
        %v983 = vadd.f32 %v979, %v981
        %v984 = vmax.f32 %v962, %v982
        %v985 = vmax.f32 %v963, %v983
        %s986 = sld [smem:[#allocation2 + $0x7]]
        %v987 = vstv %s986
        %v988 = vmul.f32 %v516, %v987
        %v989 = vmul.f32 %v521, %v987
        %s990 = sld [smem:[#allocation2 + $0x12]]
        %v991 = vstv %s990
        %v992 = vmul.f32 %v672, %v991
        %v993 = vmul.f32 %v677, %v991
        %v994 = vadd.f32 %v988, %v992
        %v995 = vadd.f32 %v989, %v993
        %s996 = sld [smem:[#allocation2 + $0x1d]]
        %v997 = vstv %s996
        %v998 = vmul.f32 %v828, %v997
        %v999 = vmul.f32 %v833, %v997
        %v1000 = vadd.f32 %v994, %v998
        %v1001 = vadd.f32 %v995, %v999
        %s1002 = sld [smem:[#allocation6 + $0x7]]
        %v1003 = vstv %s1002
        %v1004 = vadd.f32 %v1000, %v1003
        %v1005 = vadd.f32 %v1001, %v1003
        %v1006 = vmax.f32 %v984, %v1004
        %v1007 = vmax.f32 %v985, %v1005
        %s1008 = sld [smem:[#allocation2 + $0x8]]
        %v1009 = vstv %s1008
        %v1010 = vmul.f32 %v516, %v1009
        %v1011 = vmul.f32 %v521, %v1009
        %s1012 = sld [smem:[#allocation2 + $0x13]]
        %v1013 = vstv %s1012
        %v1014 = vmul.f32 %v672, %v1013
        %v1015 = vmul.f32 %v677, %v1013
        %v1016 = vadd.f32 %v1010, %v1014
        %v1017 = vadd.f32 %v1011, %v1015
        %s1018 = sld [smem:[#allocation2 + $0x1e]]
        %v1019 = vstv %s1018
        %v1020 = vmul.f32 %v828, %v1019
        %v1021 = vmul.f32 %v833, %v1019
        %v1022 = vadd.f32 %v1016, %v1020
        %v1023 = vadd.f32 %v1017, %v1021
        %s1024 = sld [smem:[#allocation6 + $0x8]]
        %v1025 = vstv %s1024
        %v1026 = vadd.f32 %v1022, %v1025
        %v1027 = vadd.f32 %v1023, %v1025
        %v1028 = vmax.f32 %v1006, %v1026
        %v1029 = vmax.f32 %v1007, %v1027
        %s1030 = sld [smem:[#allocation2 + $0x9]]
        %v1031 = vstv %s1030
        %v1032 = vmul.f32 %v516, %v1031
        %v1033 = vmul.f32 %v521, %v1031
        %s1034 = sld [smem:[#allocation2 + $0x14]]
        %v1035 = vstv %s1034
        %v1036 = vmul.f32 %v672, %v1035
        %v1037 = vmul.f32 %v677, %v1035
        %v1038 = vadd.f32 %v1032, %v1036
        %v1039 = vadd.f32 %v1033, %v1037
        %s1040 = sld [smem:[#allocation2 + $0x1f]]
        %v1041 = vstv %s1040
        %v1042 = vmul.f32 %v828, %v1041
        %v1043 = vmul.f32 %v833, %v1041
        %v1044 = vadd.f32 %v1038, %v1042
        %v1045 = vadd.f32 %v1039, %v1043
        %s1046 = sld [smem:[#allocation6 + $0x9]]
        %v1047 = vstv %s1046
        %v1048 = vadd.f32 %v1044, %v1047
        %v1049 = vadd.f32 %v1045, %v1047
        %v1050 = vmax.f32 %v1028, %v1048
        %v1051 = vmax.f32 %v1029, %v1049
        %s1052 = sld [smem:[#allocation2 + $0xa]]
        %v1053 = vstv %s1052
        %v1054 = vmul.f32 %v516, %v1053
        %v1055 = vmul.f32 %v521, %v1053
        %s1056 = sld [smem:[#allocation2 + $0x15]]
        %v1057 = vstv %s1056
        %v1058 = vmul.f32 %v672, %v1057
        %v1059 = vmul.f32 %v677, %v1057
        %v1060 = vadd.f32 %v1054, %v1058
        %v1061 = vadd.f32 %v1055, %v1059
        %s1062 = sld [smem:[#allocation2 + $0x20]]
        %v1063 = vstv %s1062
        %v1064 = vmul.f32 %v828, %v1063
        %v1065 = vmul.f32 %v833, %v1063
        %v1066 = vadd.f32 %v1060, %v1064
        %v1067 = vadd.f32 %v1061, %v1065
        %s1068 = sld [smem:[#allocation6 + $0xa]]
        %v1069 = vstv %s1068
        %v1070 = vadd.f32 %v1066, %v1069
        %v1071 = vadd.f32 %v1067, %v1069
        %vm1072 = vcmp.gt.f32.partialorder %v1050, %v854
        %vm1073 = vcmp.gt.f32.partialorder %v1051, %v855
        %vm1074 = vcmp.ge.f32.partialorder %v1050, %v1070
        %vm1075 = vcmp.ge.f32.partialorder %v1051, %v1071
        %vm1076 = vmand %vm1072, %vm1074
        %vm1077 = vmand %vm1073, %vm1075
        %v1078 = vsel %vm1076, 1, 0
        %v1079 = vsel %vm1077, 1, 0
        %v1080 = vcvt.s32.f32 %v1078
        %v1081 = vcvt.s32.f32 %v1079
        %v1082 = vld [vmem:[%s4] sm:$0xff]
        %v1083 = vld [vmem:[%s4 + $0x8] sm:$0xff]
        %v1085 = vsel %vm361, %v1082, 0
        %v1088 = vsel %vm361, %v1083, 0
        %1090 = vmatprep.subr.mxu0 0.0
        %1091 = vmatpush1.msra.mxu0 %v1080
        %1092 = vmatprep.subr.mxu0 0.0
        %1093 = vmatpush1.msra.mxu0 %v1081
        %1094 = vmatprep.subr.mxu0 0.0
        %1095 = vmatpush1.msra.mxu0 0.0
        %1096 = vmatprep.subr.mxu0 0.0
        %1097 = vmatpush1.msra.mxu0 0.0
        %1098 = vmatprep.subr.mxu0 0.0
        %1099 = vmatpush1.msra.mxu0 0.0
        %1100 = vmatprep.subr.mxu0 0.0
        %1101 = vmatpush1.msra.mxu0 0.0
        %1102 = vmatprep.subr.mxu0 0.0
        %1103 = vmatpush1.msra.mxu0 0.0
        %1104 = vmatprep.subr.mxu0 0.0
        %1105 = vmatpush1.msra.mxu0 0.0
        %1106 = vmatprep.subr.mxu0 0.0
        %1107 = vmatpush1.msra.mxu0 0.0
        %1108 = vmatprep.subr.mxu0 0.0
        %1109 = vmatpush1.msra.mxu0 0.0
        %1110 = vmatprep.subr.mxu0 0.0
        %1111 = vmatpush1.msra.mxu0 0.0
        %1112 = vmatprep.subr.mxu0 0.0
        %1113 = vmatpush1.msra.mxu0 0.0
        %1114 = vmatprep.subr.mxu0 0.0
        %1115 = vmatpush1.msra.mxu0 0.0
        %1116 = vmatprep.subr.mxu0 0.0
        %1117 = vmatpush1.msra.mxu0 0.0
        %1118 = vmatprep.subr.mxu0 0.0
        %1119 = vmatpush1.msra.mxu0 0.0
        %1120 = vmatprep.subr.mxu0 0.0
        %1121 = vmatpush1.msra.mxu0 0.0
        %1122 = vmatprep.subr.mxu0 0.0
        %1123 = vmatpush1.msra.mxu0 0.0
        %1124 = vmatprep.subr.mxu0 0.0
        %1125 = vmatpush1.msra.mxu0 0.0
        %1126 = vmatprep.subr.mxu0 0.0
        %1127 = vmatpush1.msra.mxu0 0.0
        %1128 = vmatprep.subr.mxu0 0.0
        %1129 = vmatpush1.msra.mxu0 0.0
        %1130 = vmatprep.subr.mxu0 0.0
        %1131 = vmatpush1.msra.mxu0 0.0
        %1132 = vmatprep.subr.mxu0 0.0
        %1133 = vmatpush1.msra.mxu0 0.0
        %1134 = vmatprep.subr.mxu0 0.0
        %1135 = vmatpush1.msra.mxu0 0.0
        %1136 = vmatprep.subr.mxu0 0.0
        %1137 = vmatpush1.msra.mxu0 0.0
        %1138 = vmatprep.subr.mxu0 0.0
        %1139 = vmatpush1.msra.mxu0 0.0
        %1140 = vmatprep.subr.mxu0 0.0
        %1141 = vmatpush1.msra.mxu0 0.0
        %1142 = vmatprep.subr.mxu0 0.0
        %1143 = vmatpush1.msra.mxu0 0.0
        %1144 = vmatprep.subr.mxu0 0.0
        %1145 = vmatpush1.msra.mxu0 0.0
        %1146 = vmatprep.subr.mxu0 0.0
        %1147 = vmatpush1.msra.mxu0 0.0
        %1148 = vmatprep.subr.mxu0 0.0
        %1149 = vmatpush1.msra.mxu0 0.0
        %1150 = vmatprep.subr.mxu0 0.0
        %1151 = vmatpush1.msra.mxu0 0.0
        %1152 = vmatprep.subr.mxu0 0.0
        %1153 = vmatpush1.msra.mxu0 0.0
        %1154 = vmatprep.mubr.f32.mxu0 0.0
        %1155 = vmatmul.mubr.f32.gmra.mrb[0].mxu0 %v1085
        %v1156 = vpop.f32.mrb[0].mxu0
        %v1157 = vadd.f32 0.0, %v1156
        %v1158 = vpop.f32.mrb[0].mxu0
        %1159 = vmatprep.mubr.f32.mxu0 0.0
        %1160 = vmatmul.mubr.f32.gmra.mrb[0].mxu0 %v1088
        %v1161 = vpop.f32.mrb[0].mxu0
        %v1162 = vadd.f32 0.0, %v1161
        %v1163 = vpop.f32.mrb[0].mxu0
        %1164 = vdwg.mxu0
        %v1165 = vld [vmem:[%s5] sm:$0xff]
        %v1166 = vld [vmem:[%s5 + $0x8] sm:$0xff]
        %v1168 = vsel %vm361, %v1157, 0
        %v1171 = vsel %vm361, %v1162, 0
        %1173 = vmatprep.subr.mxu0 0.0
        %1174 = vmatpush1.msra.mxu0 %v1165
        %1175 = vmatprep.subr.mxu0 0.0
        %1176 = vmatpush1.msra.mxu0 %v1166
        %1177 = vmatprep.subr.mxu0 0.0
        %1178 = vmatpush1.msra.mxu0 0.0
        %1179 = vmatprep.subr.mxu0 0.0
        %1180 = vmatpush1.msra.mxu0 0.0
        %1181 = vmatprep.subr.mxu0 0.0
        %1182 = vmatpush1.msra.mxu0 0.0
        %1183 = vmatprep.subr.mxu0 0.0
        %1184 = vmatpush1.msra.mxu0 0.0
        %1185 = vmatprep.subr.mxu0 0.0
        %1186 = vmatpush1.msra.mxu0 0.0
        %1187 = vmatprep.subr.mxu0 0.0
        %1188 = vmatpush1.msra.mxu0 0.0
        %1189 = vmatprep.subr.mxu0 0.0
        %1190 = vmatpush1.msra.mxu0 0.0
        %1191 = vmatprep.subr.mxu0 0.0
        %1192 = vmatpush1.msra.mxu0 0.0
        %1193 = vmatprep.subr.mxu0 0.0
        %1194 = vmatpush1.msra.mxu0 0.0
        %1195 = vmatprep.subr.mxu0 0.0
        %1196 = vmatpush1.msra.mxu0 0.0
        %1197 = vmatprep.subr.mxu0 0.0
        %1198 = vmatpush1.msra.mxu0 0.0
        %1199 = vmatprep.subr.mxu0 0.0
        %1200 = vmatpush1.msra.mxu0 0.0
        %1201 = vmatprep.subr.mxu0 0.0
        %1202 = vmatpush1.msra.mxu0 0.0
        %1203 = vmatprep.subr.mxu0 0.0
        %1204 = vmatpush1.msra.mxu0 0.0
        %1205 = vmatprep.subr.mxu0 0.0
        %1206 = vmatpush1.msra.mxu0 0.0
        %1207 = vmatprep.subr.mxu0 0.0
        %1208 = vmatpush1.msra.mxu0 0.0
        %1209 = vmatprep.subr.mxu0 0.0
        %1210 = vmatpush1.msra.mxu0 0.0
        %1211 = vmatprep.subr.mxu0 0.0
        %1212 = vmatpush1.msra.mxu0 0.0
        %1213 = vmatprep.subr.mxu0 0.0
        %1214 = vmatpush1.msra.mxu0 0.0
        %1215 = vmatprep.subr.mxu0 0.0
        %1216 = vmatpush1.msra.mxu0 0.0
        %1217 = vmatprep.subr.mxu0 0.0
        %1218 = vmatpush1.msra.mxu0 0.0
        %1219 = vmatprep.subr.mxu0 0.0
        %1220 = vmatpush1.msra.mxu0 0.0
        %1221 = vmatprep.subr.mxu0 0.0
        %1222 = vmatpush1.msra.mxu0 0.0
        %1223 = vmatprep.subr.mxu0 0.0
        %1224 = vmatpush1.msra.mxu0 0.0
        %1225 = vmatprep.subr.mxu0 0.0
        %1226 = vmatpush1.msra.mxu0 0.0
        %1227 = vmatprep.subr.mxu0 0.0
        %1228 = vmatpush1.msra.mxu0 0.0
        %1229 = vmatprep.subr.mxu0 0.0
        %1230 = vmatpush1.msra.mxu0 0.0
        %1231 = vmatprep.subr.mxu0 0.0
        %1232 = vmatpush1.msra.mxu0 0.0
        %1233 = vmatprep.subr.mxu0 0.0
        %1234 = vmatpush1.msra.mxu0 0.0
        %1235 = vmatprep.subr.mxu0 0.0
        %1236 = vmatpush1.msra.mxu0 0.0
        %1237 = vmatprep.mubr.f32.mxu0 0.0
        %1238 = vmatmul.mubr.f32.gmra.mrb[0].mxu0 %v1168
        %v1239 = vpop.f32.mrb[0].mxu0
        %v1240 = vadd.f32 0.0, %v1239
        %v1241 = vpop.f32.mrb[0].mxu0
        %1242 = vmatprep.mubr.f32.mxu0 0.0
        %1243 = vmatmul.mubr.f32.gmra.mrb[0].mxu0 %v1171
        %v1244 = vpop.f32.mrb[0].mxu0
        %v1245 = vadd.f32 0.0, %v1244
        %v1246 = vpop.f32.mrb[0].mxu0
        %1247 = vdwg.mxu0
        %1248 = vst.msk [vmem:[%s350] sm:$0xff] %vm361, %v1240
        %1249 = vst.msk [vmem:[%s350 + $0x8] sm:$0xff] %vm361, %v1245
        %s1250 = sand.u32 %s185, 1
        %s1251 = scalar_lea.sflag [#allocation4], %s1250
        %s1252 = sand.u32 %s185, 1
        %s1253 = smul.addr %s1252, 16
        %s1254 = scalar_lea.vmem [#allocation12], %s1253
        // Predicated region
        $region69: #{face_image_forward.1} parent=47 // pred_check
          %p1255 = pneg %p195
        $region70: #{face_image_forward.1} parent=47 // pred_check_branch
          %1257 = sbr.rel (%p1255) target = $region72
        $region71: #{face_image_forward.1} parent=47 // pred_region
          %s1259 = ssub.s32 256, 256
          %1260 = vsyncadd %s1251, %s1259
          %s1261 = smul.addr %s25, 2
          %s1262 = smul.addr %s1261, 128
          %s1263 = scalar_lea.hbm %s7, %s1262
          %s1264 = sshll.u32 %s1254, 4
          %s1265 = int_to_ptr.vmem [resolvable:$true] %s1264
          %1270 = dma.vmem_to_hbm [thread:$0]  %s1265, 256, %s1263, %s1251, 128, 128, 8
        $region72: #{face_image_forward.1} parent=47 // pred_fallthru
          _
      $region48: #{face_image_forward.1} parent=5 // pred_fallthru
        _
      %p1271 = scmp.le.s32.totalorder 2, %s20
      // Predicated region
      $region73: #{face_image_forward.1} parent=5 // pred_check
        %p1272 = pneg %p1271
      $region74: #{face_image_forward.1} parent=5 // pred_check_branch
        %1274 = sbr.rel (%p1272) target = $region76
      $region75: #{face_image_forward.1} parent=5 // pred_region
        %s1275 = ssub.s32 %s20, 2
        // Predicated region
        $region77: #{face_image_forward.1} parent=75 // pred_check
          %p1276 = pneg %p201
        $region78: #{face_image_forward.1} parent=75 // pred_check_branch
          %1278 = sbr.rel (%p1276) target = $region80
        $region79: #{face_image_forward.1} parent=75 // pred_region
          %s1279 = sand.u32 %s186, 1
          %s1280 = scalar_lea.sflag [#allocation4], %s1279
          %s1281 = sand.u32 %s186, 1
          %s1282 = smul.addr %s1281, 16
          %s1283 = scalar_lea.vmem [#allocation12], %s1282
          %1284 = dma.done %s1280, 256
        $region80: #{face_image_forward.1} parent=75 // pred_fallthru
          _
      $region76: #{face_image_forward.1} parent=5 // pred_fallthru
        _
    $region6: #{face_image_forward.1} parent=1 // loop_footer
      %s24 = sadd.s32 1, %s20
    $region7: #{face_image_forward.1} parent=1 // loop_footer_branch
      %19 = sbr.rel target = $region3
    $region8: #{face_image_forward.1} parent=1 // loop_exit
      _
    %1285 = vsyncpa [#allocation3], 1
    %s1286 = scalar_lea.sflag [#allocation3], 1
    %1287 = vsyncpa %s1286, 1
    %1288 = vsyncpa [#allocation10], 1
    %1289 = vsyncpa [#allocation4], 1
    %s1290 = scalar_lea.sflag [#allocation4], 1
    %1291 = vsyncpa %s1290, 1
    %1292 = vsyncpa [#allocation5], 1
    %s1293 = scalar_lea.sflag [#allocation5], 1
    %1294 = vsyncpa %s1293, 1
    %1295 = vsyncpa [#allocation7], 1

</llo_original>
